<compile_context>
chip_gen: v5e
topology: v5e:2x2
jax: 0.10.0
libtpu: 0.0.40
codegen_flags: <defaults>
</compile_context>

<pallas_src>
import jax
import jax.numpy as jnp
from jax.experimental import pallas as pl
from jax.experimental.pallas import tpu as pltpu

LN_EPS = 1e-5


def _round_up(n, m):
    return ((n + m - 1) // m) * m


def _proj_ln_kernel(x_ref, w_ref, p_ref, o_ref):
    # x_ref: (TM, K)   w_ref: (K, C) bf16   p_ref: (3, C) f32 [bias, gamma, beta]
    # o_ref: (TM, C)
    x = x_ref[...]
    if x.dtype != jnp.bfloat16:
        x = x.astype(jnp.bfloat16)          # bf16 MXU path; f32 accumulation below
    y = jnp.dot(x, w_ref[...], preferred_element_type=jnp.float32)

    p = p_ref[...].astype(jnp.float32)
    y = y + p[0:1, :]                        # bias

    # LayerNorm over the feature (lane) axis — two-pass, biased variance.
    inv_c = jnp.float32(1.0 / y.shape[-1])
    mean = jnp.sum(y, axis=-1, keepdims=True) * inv_c
    yc = y - mean
    var = jnp.sum(yc * yc, axis=-1, keepdims=True) * inv_c
    yhat = yc * jax.lax.rsqrt(var + LN_EPS)
    o_ref[...] = (yhat * p[1:2, :] + p[2:3, :]).astype(o_ref.dtype)


def proj_layernorm(x, w, params, *, tm=512):
    """x: [M, K]; w: [K, C] (bf16); params: [3, C] (bias, gamma, beta) -> [M, C]."""
    M, K = x.shape
    C = w.shape[1]

    # Row tile: at most `tm`, multiple of the sublane packing for x's dtype.
    row_mult = 16 if x.dtype == jnp.bfloat16 else 8
    tm_eff = min(tm, _round_up(M, row_mult))
    # v7x has 2 TensorCores: make sure the parallel grid has >=2 steps when M
    # is big enough, so the second core isn't idle.
    if M > row_mult and pl.cdiv(M, tm_eff) < 2:
        tm_eff = _round_up(pl.cdiv(M, 2), row_mult)
    grid = (pl.cdiv(M, tm_eff),)

    # NOTE: when tm_eff does not divide M, the last block reads past the end
    # of x (unspecified data). LayerNorm is per-row and out-of-bounds rows are
    # masked on store, so valid rows are unaffected. Do not "fix" this by
    # padding on the host — that costs two extra HBM passes.
    flops = 2 * M * K * C + 10 * M * C
    bytes_accessed = (M * K * x.dtype.itemsize
                      + K * C * w.dtype.itemsize
                      + M * C * x.dtype.itemsize
                      + 3 * C * 4)

    return pl.pallas_call(
        _proj_ln_kernel,
        out_shape=jax.ShapeDtypeStruct((M, C), x.dtype),
        grid_spec=pltpu.PrefetchScalarGridSpec(
            num_scalar_prefetch=0,
            grid=grid,
            in_specs=[
                pl.BlockSpec((tm_eff, K), lambda i: (i, 0)),
                pl.BlockSpec((K, C), lambda i: (0, 0)),    # grid-invariant weight
                pl.BlockSpec((3, C), lambda i: (0, 0)),    # packed bias/gamma/beta
            ],
            out_specs=pl.BlockSpec((tm_eff, C), lambda i: (i, 0)),
        ),
        compiler_params=pltpu.CompilerParams(
            dimension_semantics=("parallel",),
            vmem_limit_bytes=48 * 1024 * 1024,
        ),
        cost_estimate=pl.CostEstimate(
            flops=flops, transcendentals=M, bytes_accessed=bytes_accessed),
    )(x, w, params)


@jax.jit
def _forward(vit, cnn, txt, vit_w, vit_b, cnn_w, cnn_b, txt_w, txt_b, ln_g, ln_b):
    # Single XLA program: all present branches' pallas_calls scheduled together.
    def branch(x, w, b):
        if x is None:
            return None
        B, S, D = x.shape
        params = jnp.stack([b, ln_g, ln_b], axis=0)      # (3, C) f32
        out = proj_layernorm(x.reshape(B * S, D), w, params)
        return out.reshape(B, S, out.shape[-1])

    return (branch(vit, vit_w, vit_b),
            branch(cnn, cnn_w, cnn_b),
            branch(txt, txt_w, txt_b))


def _init_linear(key, in_dim, out_dim):
    # nn.Linear default init: U(-1/sqrt(in_dim), 1/sqrt(in_dim)) for W and b.
    kw, kb = jax.random.split(key)
    bound = 1.0 / jnp.sqrt(in_dim)
    # W stored already transposed to [in_dim, out_dim] for x @ W, in bf16 for
    # the MXU / halved HBM traffic; bias stays f32 (added after the matmul).
    w = jax.random.uniform(kw, (in_dim, out_dim), jnp.float32, -bound, bound)
    b = jax.random.uniform(kb, (out_dim,), jnp.float32, -bound, bound)
    return w.astype(jnp.bfloat16), b


class CrossModalEmbeddingAlignmentPallas:
    def __init__(self, common_dim, cnn_dim=1408, vit_dim=768, txt_dim=768,
                 query_dim=768, key=None):
        if key is None:
            key = jax.random.PRNGKey(0)
        k1, k2, k3, k4 = jax.random.split(key, 4)
        self.vit_w, self.vit_b = _init_linear(k1, vit_dim, common_dim)
        self.cnn_w, self.cnn_b = _init_linear(k2, cnn_dim, common_dim)
        self.txt_w, self.txt_b = _init_linear(k3, txt_dim, common_dim)
        # query_proj is initialized (as in the PyTorch module) but unused in forward.
        self.qry_w, self.qry_b = _init_linear(k4, query_dim, common_dim)
        # shared LayerNorm params
        self.ln_g = jnp.ones((common_dim,), jnp.float32)
        self.ln_b = jnp.zeros((common_dim,), jnp.float32)
        self.common_dim = common_dim
        # NOTE: if common_dim is not a multiple of 128, consider padding C to
        # the next multiple of 128 (lane-dense output stores) and slicing.

    def __call__(self, vit_patches=None, cnn_patches=None, text_embeddings=None):
        return _forward(vit_patches, cnn_patches, text_embeddings,
                        self.vit_w, self.vit_b,
                        self.cnn_w, self.cnn_b,
                        self.txt_w, self.txt_b,
                        self.ln_g, self.ln_b)


def _ref_branch(x, w, b, g, beta):
    # Pure-JAX reference (f32 math; weight values are the bf16-stored ones).
    y = jnp.einsum("bsd,dc->bsc", x.astype(jnp.float32), w.astype(jnp.float32)) + b
    mean = jnp.mean(y, axis=-1, keepdims=True)
    var = jnp.mean((y - mean) ** 2, axis=-1, keepdims=True)
    return (y - mean) / jnp.sqrt(var + LN_EPS) * g + beta


if __name__ == "__main__":
    # small shapes: batch=2, seq=8; feature dims shrunk but lane-aligned
    B, S = 2, 8
    COMMON, VIT_D, CNN_D, TXT_D = 128, 256, 384, 256

    key = jax.random.PRNGKey(0)
    k_vit, k_cnn, k_txt, k_par = jax.random.split(key, 4)
    vit_patches = jax.random.normal(k_vit, (B, S, VIT_D), jnp.float32)
    cnn_patches = jax.random.normal(k_cnn, (B, S, CNN_D), jnp.float32)
    text_embeddings = jax.random.normal(k_txt, (B, S, TXT_D), jnp.float32)

    mod = CrossModalEmbeddingAlignmentPallas(
        COMMON, cnn_dim=CNN_D, vit_dim=VIT_D, txt_dim=TXT_D, query_dim=VIT_D,
        key=k_par)

    vit_out, cnn_out, txt_out = mod(vit_patches, cnn_patches, text_embeddings)
    jax.block_until_ready((vit_out, cnn_out, txt_out))

    # Correctness check against the pure-JAX reference. The kernel feeds the
    # MXU bf16 operands (f32 accumulation), so tolerance is loosened vs a pure
    # f32 pipeline — a precision tradeoff, not a bug.
    vit_ref = _ref_branch(vit_patches, mod.vit_w, mod.vit_b, mod.ln_g, mod.ln_b)
    cnn_ref = _ref_branch(cnn_patches, mod.cnn_w, mod.cnn_b, mod.ln_g, mod.ln_b)
    txt_ref = _ref_branch(text_embeddings, mod.txt_w, mod.txt_b, mod.ln_g, mod.ln_b)
    assert jnp.allclose(vit_out, vit_ref, atol=2e-2, rtol=2e-2)
    assert jnp.allclose(cnn_out, cnn_ref, atol=2e-2, rtol=2e-2)
    assert jnp.allclose(txt_out, txt_ref, atol=2e-2, rtol=2e-2)

    print("KERNEL_OK")
</pallas_src>

<mosaic_0001>
module attributes {stable_mosaic.version = 11 : i64} {
  func.func @_proj_ln_kernel(%arg0: i32, %arg1: memref<8x256xf32, #tpu.memory_space<vmem>>, %arg2: memref<256x128xbf16, #tpu.memory_space<vmem>>, %arg3: memref<3x128xf32, #tpu.memory_space<vmem>>, %arg4: memref<8x128xf32, #tpu.memory_space<vmem>>) attributes {dimension_semantics = [#tpu.dimension_semantics<parallel>], iteration_bounds = array<i64: 2>, scalar_prefetch = 0 : i64, scratch_operands = 0 : i64, tpu.core_type = #tpu.core_type<tc>, window_params = [{transform_indices = @transform_0, window_bounds = array<i64: 8, 256>}, {pipeline_mode = #tpu.pipeline_mode<synchronous>, transform_indices = @transform_1, window_bounds = array<i64: 256, 128>}, {pipeline_mode = #tpu.pipeline_mode<synchronous>, transform_indices = @transform_2, window_bounds = array<i64: 3, 128>}, {transform_indices = @transform_3, window_bounds = array<i64: 8, 128>}]} {
    %c0 = arith.constant 0 : index
    %c0_0 = arith.constant 0 : index
    %0 = vector.load %arg1[%c0, %c0_0] : memref<8x256xf32, #tpu.memory_space<vmem>>, vector<8x256xf32>
    %1 = arith.truncf %0 : vector<8x256xf32> to vector<8x256xbf16>
    %c0_1 = arith.constant 0 : index
    %c0_2 = arith.constant 0 : index
    %2 = vector.load %arg2[%c0_1, %c0_2] : memref<256x128xbf16, #tpu.memory_space<vmem>>, vector<256x128xbf16>
    %cst = arith.constant dense<0.000000e+00> : vector<8x128xf32>
    %3 = tpu.matmul %1, %2, %cst {dimension_numbers = #tpu.dot_dimension_numbers<[1], [0], [0], [1], [0, 0, 1, 1], [], []>} : vector<8x256xbf16>, vector<256x128xbf16>, vector<8x128xf32> -> vector<8x128xf32>
    %c0_3 = arith.constant 0 : index
    %c0_4 = arith.constant 0 : index
    %4 = vector.load %arg3[%c0_3, %c0_4] : memref<3x128xf32, #tpu.memory_space<vmem>>, vector<3x128xf32>
    %5 = vector.extract_strided_slice %4 {offsets = [0, 0], sizes = [1, 128], strides = [1, 1]} : vector<3x128xf32> to vector<1x128xf32>
    %6 = vector.broadcast %5 : vector<1x128xf32> to vector<8x128xf32>
    %7 = arith.addf %3, %6 : vector<8x128xf32>
    %cst_5 = arith.constant dense<0.000000e+00> : vector<8xf32>
    %8 = vector.multi_reduction <add>, %7, %cst_5 [1] : vector<8x128xf32> to vector<8xf32>
    %9 = vector.shape_cast %8 : vector<8xf32> to vector<8x1xf32>
    %cst_6 = arith.constant 7.812500e-03 : f32
    %10 = vector.broadcast %cst_6 : f32 to vector<8x1xf32>
    %11 = arith.mulf %9, %10 : vector<8x1xf32>
    %12 = vector.broadcast %11 : vector<8x1xf32> to vector<8x128xf32>
    %13 = arith.subf %7, %12 : vector<8x128xf32>
    %14 = arith.mulf %13, %13 : vector<8x128xf32>
    %cst_7 = arith.constant dense<0.000000e+00> : vector<8xf32>
    %15 = vector.multi_reduction <add>, %14, %cst_7 [1] : vector<8x128xf32> to vector<8xf32>
    %16 = vector.shape_cast %15 : vector<8xf32> to vector<8x1xf32>
    %cst_8 = arith.constant 7.812500e-03 : f32
    %17 = vector.broadcast %cst_8 : f32 to vector<8x1xf32>
    %18 = arith.mulf %16, %17 : vector<8x1xf32>
    %cst_9 = arith.constant 9.99999974E-6 : f32
    %19 = vector.broadcast %cst_9 : f32 to vector<8x1xf32>
    %20 = arith.addf %18, %19 : vector<8x1xf32>
    %21 = math.rsqrt %20 : vector<8x1xf32>
    %22 = vector.broadcast %21 : vector<8x1xf32> to vector<8x128xf32>
    %23 = arith.mulf %13, %22 : vector<8x128xf32>
    %24 = vector.extract_strided_slice %4 {offsets = [1, 0], sizes = [1, 128], strides = [1, 1]} : vector<3x128xf32> to vector<1x128xf32>
    %25 = vector.broadcast %24 : vector<1x128xf32> to vector<8x128xf32>
    %26 = arith.mulf %23, %25 : vector<8x128xf32>
    %27 = vector.extract_strided_slice %4 {offsets = [2, 0], sizes = [1, 128], strides = [1, 1]} : vector<3x128xf32> to vector<1x128xf32>
    %28 = vector.broadcast %27 : vector<1x128xf32> to vector<8x128xf32>
    %29 = arith.addf %26, %28 : vector<8x128xf32>
    %c0_10 = arith.constant 0 : index
    %c0_11 = arith.constant 0 : index
    %30 = vector.load %arg4[%c0_10, %c0_11] : memref<8x128xf32, #tpu.memory_space<vmem>>, vector<8x128xf32>
    tpu.vector_store %arg4[%c0_10, %c0_11], %29 {strides = array<i32>} : memref<8x128xf32, #tpu.memory_space<vmem>>, vector<8x128xf32>,
    return
  }
  func.func @transform_0(%arg0: i32) -> (i32, i32) {
    %c0_i32 = arith.constant 0 : i32
    %c0_i32_0 = arith.constant 0 : i32
    return %arg0, %c0_i32 : i32, i32
  }
  func.func @transform_1(%arg0: i32) -> (i32, i32) {
    %c0_i32 = arith.constant 0 : i32
    %c0_i32_0 = arith.constant 0 : i32
    %c0_i32_1 = arith.constant 0 : i32
    return %c0_i32, %c0_i32_0 : i32, i32
  }
  func.func @transform_2(%arg0: i32) -> (i32, i32) {
    %c0_i32 = arith.constant 0 : i32
    %c0_i32_0 = arith.constant 0 : i32
    %c0_i32_1 = arith.constant 0 : i32
    return %c0_i32, %c0_i32_0 : i32, i32
  }
  func.func @transform_3(%arg0: i32) -> (i32, i32) {
    %c0_i32 = arith.constant 0 : i32
    %c0_i32_0 = arith.constant 0 : i32
    return %arg0, %c0_i32 : i32, i32
  }
}

module attributes {stable_mosaic.version = 11 : i64} {
  func.func @_proj_ln_kernel(%arg0: i32, %arg1: memref<8x256xf32, #tpu.memory_space<vmem>>, %arg2: memref<256x128xbf16, #tpu.memory_space<vmem>>, %arg3: memref<3x128xf32, #tpu.memory_space<vmem>>, %arg4: memref<8x128xf32, #tpu.memory_space<vmem>>) attributes {dimension_semantics = [#tpu.dimension_semantics<parallel>], iteration_bounds = array<i64: 2>, scalar_prefetch = 0 : i64, scratch_operands = 0 : i64, tpu.core_type = #tpu.core_type<tc>, window_params = [{transform_indices = @transform_0, window_bounds = array<i64: 8, 256>}, {pipeline_mode = #tpu.pipeline_mode<synchronous>, transform_indices = @transform_1, window_bounds = array<i64: 256, 128>}, {pipeline_mode = #tpu.pipeline_mode<synchronous>, transform_indices = @transform_2, window_bounds = array<i64: 3, 128>}, {transform_indices = @transform_3, window_bounds = array<i64: 8, 128>}]} {
    %c0 = arith.constant 0 : index
    %c0_0 = arith.constant 0 : index
    %0 = vector.load %arg1[%c0, %c0_0] : memref<8x256xf32, #tpu.memory_space<vmem>>, vector<8x256xf32>
    %1 = arith.truncf %0 : vector<8x256xf32> to vector<8x256xbf16>
    %c0_1 = arith.constant 0 : index
    %c0_2 = arith.constant 0 : index
    %2 = vector.load %arg2[%c0_1, %c0_2] : memref<256x128xbf16, #tpu.memory_space<vmem>>, vector<256x128xbf16>
    %cst = arith.constant dense<0.000000e+00> : vector<8x128xf32>
    %3 = tpu.matmul %1, %2, %cst {dimension_numbers = #tpu.dot_dimension_numbers<[1], [0], [0], [1], [0, 0, 1, 1], [], []>} : vector<8x256xbf16>, vector<256x128xbf16>, vector<8x128xf32> -> vector<8x128xf32>
    %c0_3 = arith.constant 0 : index
    %c0_4 = arith.constant 0 : index
    %4 = vector.load %arg3[%c0_3, %c0_4] : memref<3x128xf32, #tpu.memory_space<vmem>>, vector<3x128xf32>
    %5 = vector.extract_strided_slice %4 {offsets = [0, 0], sizes = [1, 128], strides = [1, 1]} : vector<3x128xf32> to vector<1x128xf32>
    %6 = vector.broadcast %5 : vector<1x128xf32> to vector<8x128xf32>
    %7 = arith.addf %3, %6 : vector<8x128xf32>
    %cst_5 = arith.constant dense<0.000000e+00> : vector<8xf32>
    %8 = vector.multi_reduction <add>, %7, %cst_5 [1] : vector<8x128xf32> to vector<8xf32>
    %9 = vector.shape_cast %8 : vector<8xf32> to vector<8x1xf32>
    %cst_6 = arith.constant 7.812500e-03 : f32
    %10 = vector.broadcast %cst_6 : f32 to vector<8x1xf32>
    %11 = arith.mulf %9, %10 : vector<8x1xf32>
    %12 = vector.broadcast %11 : vector<8x1xf32> to vector<8x128xf32>
    %13 = arith.subf %7, %12 : vector<8x128xf32>
    %14 = arith.mulf %13, %13 : vector<8x128xf32>
    %cst_7 = arith.constant dense<0.000000e+00> : vector<8xf32>
    %15 = vector.multi_reduction <add>, %14, %cst_7 [1] : vector<8x128xf32> to vector<8xf32>
    %16 = vector.shape_cast %15 : vector<8xf32> to vector<8x1xf32>
    %cst_8 = arith.constant 7.812500e-03 : f32
    %17 = vector.broadcast %cst_8 : f32 to vector<8x1xf32>
    %18 = arith.mulf %16, %17 : vector<8x1xf32>
    %cst_9 = arith.constant 9.99999974E-6 : f32
    %19 = vector.broadcast %cst_9 : f32 to vector<8x1xf32>
    %20 = arith.addf %18, %19 : vector<8x1xf32>
    %21 = math.rsqrt %20 : vector<8x1xf32>
    %22 = vector.broadcast %21 : vector<8x1xf32> to vector<8x128xf32>
    %23 = arith.mulf %13, %22 : vector<8x128xf32>
    %24 = vector.extract_strided_slice %4 {offsets = [1, 0], sizes = [1, 128], strides = [1, 1]} : vector<3x128xf32> to vector<1x128xf32>
    %25 = vector.broadcast %24 : vector<1x128xf32> to vector<8x128xf32>
    %26 = arith.mulf %23, %25 : vector<8x128xf32>
    %27 = vector.extract_strided_slice %4 {offsets = [2, 0], sizes = [1, 128], strides = [1, 1]} : vector<3x128xf32> to vector<1x128xf32>
    %28 = vector.broadcast %27 : vector<1x128xf32> to vector<8x128xf32>
    %29 = arith.addf %26, %28 : vector<8x128xf32>
    %c0_10 = arith.constant 0 : index
    %c0_11 = arith.constant 0 : index
    %30 = vector.load %arg4[%c0_10, %c0_11] : memref<8x128xf32, #tpu.memory_space<vmem>>, vector<8x128xf32>
    tpu.vector_store %arg4[%c0_10, %c0_11], %29 {strides = array<i32>} : memref<8x128xf32, #tpu.memory_space<vmem>>, vector<8x128xf32>,
    return
  }
  func.func @transform_0(%arg0: i32) -> (i32, i32) {
    %c0_i32 = arith.constant 0 : i32
    %c0_i32_0 = arith.constant 0 : i32
    return %arg0, %c0_i32 : i32, i32
  }
  func.func @transform_1(%arg0: i32) -> (i32, i32) {
    %c0_i32 = arith.constant 0 : i32
    %c0_i32_0 = arith.constant 0 : i32
    %c0_i32_1 = arith.constant 0 : i32
    return %c0_i32, %c0_i32_0 : i32, i32
  }
  func.func @transform_2(%arg0: i32) -> (i32, i32) {
    %c0_i32 = arith.constant 0 : i32
    %c0_i32_0 = arith.constant 0 : i32
    %c0_i32_1 = arith.constant 0 : i32
    return %c0_i32, %c0_i32_0 : i32, i32
  }
  func.func @transform_3(%arg0: i32) -> (i32, i32) {
    %c0_i32 = arith.constant 0 : i32
    %c0_i32_0 = arith.constant 0 : i32
    return %arg0, %c0_i32 : i32, i32
  }
}

module attributes {stable_mosaic.version = 11 : i64} {
  func.func @_proj_ln_kernel(%arg0: i32, %arg1: memref<8x384xf32, #tpu.memory_space<vmem>>, %arg2: memref<384x128xbf16, #tpu.memory_space<vmem>>, %arg3: memref<3x128xf32, #tpu.memory_space<vmem>>, %arg4: memref<8x128xf32, #tpu.memory_space<vmem>>) attributes {dimension_semantics = [#tpu.dimension_semantics<parallel>], iteration_bounds = array<i64: 2>, scalar_prefetch = 0 : i64, scratch_operands = 0 : i64, tpu.core_type = #tpu.core_type<tc>, window_params = [{transform_indices = @transform_0, window_bounds = array<i64: 8, 384>}, {pipeline_mode = #tpu.pipeline_mode<synchronous>, transform_indices = @transform_1, window_bounds = array<i64: 384, 128>}, {pipeline_mode = #tpu.pipeline_mode<synchronous>, transform_indices = @transform_2, window_bounds = array<i64: 3, 128>}, {transform_indices = @transform_3, window_bounds = array<i64: 8, 128>}]} {
    %c0 = arith.constant 0 : index
    %c0_0 = arith.constant 0 : index
    %0 = vector.load %arg1[%c0, %c0_0] : memref<8x384xf32, #tpu.memory_space<vmem>>, vector<8x384xf32>
    %1 = arith.truncf %0 : vector<8x384xf32> to vector<8x384xbf16>
    %c0_1 = arith.constant 0 : index
    %c0_2 = arith.constant 0 : index
    %2 = vector.load %arg2[%c0_1, %c0_2] : memref<384x128xbf16, #tpu.memory_space<vmem>>, vector<384x128xbf16>
    %cst = arith.constant dense<0.000000e+00> : vector<8x128xf32>
    %3 = tpu.matmul %1, %2, %cst {dimension_numbers = #tpu.dot_dimension_numbers<[1], [0], [0], [1], [0, 0, 1, 1], [], []>} : vector<8x384xbf16>, vector<384x128xbf16>, vector<8x128xf32> -> vector<8x128xf32>
    %c0_3 = arith.constant 0 : index
    %c0_4 = arith.constant 0 : index
    %4 = vector.load %arg3[%c0_3, %c0_4] : memref<3x128xf32, #tpu.memory_space<vmem>>, vector<3x128xf32>
    %5 = vector.extract_strided_slice %4 {offsets = [0, 0], sizes = [1, 128], strides = [1, 1]} : vector<3x128xf32> to vector<1x128xf32>
    %6 = vector.broadcast %5 : vector<1x128xf32> to vector<8x128xf32>
    %7 = arith.addf %3, %6 : vector<8x128xf32>
    %cst_5 = arith.constant dense<0.000000e+00> : vector<8xf32>
    %8 = vector.multi_reduction <add>, %7, %cst_5 [1] : vector<8x128xf32> to vector<8xf32>
    %9 = vector.shape_cast %8 : vector<8xf32> to vector<8x1xf32>
    %cst_6 = arith.constant 7.812500e-03 : f32
    %10 = vector.broadcast %cst_6 : f32 to vector<8x1xf32>
    %11 = arith.mulf %9, %10 : vector<8x1xf32>
    %12 = vector.broadcast %11 : vector<8x1xf32> to vector<8x128xf32>
    %13 = arith.subf %7, %12 : vector<8x128xf32>
    %14 = arith.mulf %13, %13 : vector<8x128xf32>
    %cst_7 = arith.constant dense<0.000000e+00> : vector<8xf32>
    %15 = vector.multi_reduction <add>, %14, %cst_7 [1] : vector<8x128xf32> to vector<8xf32>
    %16 = vector.shape_cast %15 : vector<8xf32> to vector<8x1xf32>
    %cst_8 = arith.constant 7.812500e-03 : f32
    %17 = vector.broadcast %cst_8 : f32 to vector<8x1xf32>
    %18 = arith.mulf %16, %17 : vector<8x1xf32>
    %cst_9 = arith.constant 9.99999974E-6 : f32
    %19 = vector.broadcast %cst_9 : f32 to vector<8x1xf32>
    %20 = arith.addf %18, %19 : vector<8x1xf32>
    %21 = math.rsqrt %20 : vector<8x1xf32>
    %22 = vector.broadcast %21 : vector<8x1xf32> to vector<8x128xf32>
    %23 = arith.mulf %13, %22 : vector<8x128xf32>
    %24 = vector.extract_strided_slice %4 {offsets = [1, 0], sizes = [1, 128], strides = [1, 1]} : vector<3x128xf32> to vector<1x128xf32>
    %25 = vector.broadcast %24 : vector<1x128xf32> to vector<8x128xf32>
    %26 = arith.mulf %23, %25 : vector<8x128xf32>
    %27 = vector.extract_strided_slice %4 {offsets = [2, 0], sizes = [1, 128], strides = [1, 1]} : vector<3x128xf32> to vector<1x128xf32>
    %28 = vector.broadcast %27 : vector<1x128xf32> to vector<8x128xf32>
    %29 = arith.addf %26, %28 : vector<8x128xf32>
    %c0_10 = arith.constant 0 : index
    %c0_11 = arith.constant 0 : index
    %30 = vector.load %arg4[%c0_10, %c0_11] : memref<8x128xf32, #tpu.memory_space<vmem>>, vector<8x128xf32>
    tpu.vector_store %arg4[%c0_10, %c0_11], %29 {strides = array<i32>} : memref<8x128xf32, #tpu.memory_space<vmem>>, vector<8x128xf32>,
    return
  }
  func.func @transform_0(%arg0: i32) -> (i32, i32) {
    %c0_i32 = arith.constant 0 : i32
    %c0_i32_0 = arith.constant 0 : i32
    return %arg0, %c0_i32 : i32, i32
  }
  func.func @transform_1(%arg0: i32) -> (i32, i32) {
    %c0_i32 = arith.constant 0 : i32
    %c0_i32_0 = arith.constant 0 : i32
    %c0_i32_1 = arith.constant 0 : i32
    return %c0_i32, %c0_i32_0 : i32, i32
  }
  func.func @transform_2(%arg0: i32) -> (i32, i32) {
    %c0_i32 = arith.constant 0 : i32
    %c0_i32_0 = arith.constant 0 : i32
    %c0_i32_1 = arith.constant 0 : i32
    return %c0_i32, %c0_i32_0 : i32, i32
  }
  func.func @transform_3(%arg0: i32) -> (i32, i32) {
    %c0_i32 = arith.constant 0 : i32
    %c0_i32_0 = arith.constant 0 : i32
    return %arg0, %c0_i32 : i32, i32
  }
}

</mosaic_0001>

<llo_original>
// kernel: _forward.3
$region0: #{_forward.3}
  #allocation0 [shape = 'u32[]', space=smem, size = 0x4, offset = 0x4, fixed_abs, tag = 'smem constant byte address 0x4 - core index']
  #allocation1 [shape = 'u32[72,128]{1,0:T(1,128)}', space=vmem, size = 0x9000, scoped, tag = 'internal scratch']
  %s0 = inlined_call_operand.vmem [shape: f32[16,256], index: 0, kind: input, shape index: {}]
  %s1 = inlined_call_operand.vmem [shape: bf16[256,128], index: 1, kind: input, shape index: {}]
  %s2 = inlined_call_operand.vmem [shape: f32[3,128], index: 2, kind: input, shape index: {}]
  %s3 = inlined_call_operand.hbm [shape: f32[16,128], index: 3, kind: output, shape index: {}]
  %s4 = sld [smem:[#allocation0]]
  $region45: #{_forward.3} parent=0
    _
  %s6 = ssub.s32 1, %s4
  %s7 = scalar_select 0, %s6, %s4
  $region1: #{_forward.3} parent=0
    #allocation2 [shape = 'u8[8192]{0}', space=vmem, size = 0x2000, scoped, tag = 'output window, operand 0']
    #allocation3 [shape = 's32[2]{0}', space=sflag, size = 0x8, scoped, tag = 'scoped memory for _forward.3']
    %8 = vsyncpa [#allocation3], 0
    %s9 = scalar_lea.sflag [#allocation3], 1
    %10 = vsyncpa %s9, 0
    loop: start=0, step=1, limit=4
    $region2: #{_forward.3} parent=1 // loop_pre_header
      _
    $region3: #{_forward.3} parent=1 // loop_header
      %s12 = sphi 0, %s16
      %p13 = scmp.ge.s32.totalorder %s12, 4
      %s22 = sphi 0, %s24
      %s25 = sphi 0, %s22
      %s26 = sphi 0, %s25
      %s42 = sphi 0, %s26
      %s46 = sphi 0, %s46
      %s48 = sphi 0, %s46
      %s49 = sphi 0, %s48
      %s63 = sphi 0, %s49
      %s67 = sphi 0, %s67
      %s69 = sphi 0, %s67
      %s70 = sphi 0, %s69
      %s84 = sphi 0, %s70
      %s90 = sphi 0, %s92
      %s93 = sphi 0, %s90
      %s94 = sphi 0, %s93
      %s110 = sphi 0, %s94
    $region4: #{_forward.3} parent=1 // loop_header_branch
      %15 = sbr.rel (%p13) target = $region8
    $region5: #{_forward.3} parent=1 // loop_body
      %s17 = ssub.s32 %s12, 1
      %s18 = ssub.s32 %s12, 2
      %s19 = sadd.s32 %s12, 1
      %s20 = ssub.s32 %s12, %s19
      %p21 = scmp.eq.s32.totalorder %s20, 0
      %s23 = sadd.s32 %s22, 1
      %s24 = scalar_select %p21, %s22, %s23
      %p27 = pneg %p21
      %p28 = scmp.eq.s32.totalorder %s12, 1
      %p29 = por %p27, %p28
      %p30 = scmp.ne.s32.totalorder %s22, %s25
      %p31 = scmp.eq.s32.totalorder %s12, 0
      %p32 = por %p30, %p31
      %p33 = scmp.ne.s32.totalorder %s22, %s25
      %p34 = scmp.eq.s32.totalorder %s17, 1
      %p35 = por %p33, %p34
      %p36 = scmp.ne.s32.totalorder %s25, %s26
      %p37 = scmp.eq.s32.totalorder %s17, 0
      %p38 = por %p36, %p37
      %p39 = scmp.ne.s32.totalorder %s25, %s26
      %p40 = scmp.eq.s32.totalorder %s18, 1
      %p41 = por %p39, %p40
      %p43 = scmp.ne.s32.totalorder %s26, %s42
      %p44 = scmp.eq.s32.totalorder %s18, 0
      %p45 = por %p43, %p44
      %s47 = sadd.s32 %s46, 1
      %p50 = scmp.eq.s32.totalorder %s12, 1
      %p51 = scmp.ne.s32.totalorder %s46, %s48
      %p52 = scmp.eq.s32.totalorder %s12, 0
      %p53 = por %p51, %p52
      %p54 = scmp.ne.s32.totalorder %s46, %s48
      %p55 = scmp.eq.s32.totalorder %s17, 1
      %p56 = por %p54, %p55
      %p57 = scmp.ne.s32.totalorder %s48, %s49
      %p58 = scmp.eq.s32.totalorder %s17, 0
      %p59 = por %p57, %p58
      %p60 = scmp.ne.s32.totalorder %s48, %s49
      %p61 = scmp.eq.s32.totalorder %s18, 1
      %p62 = por %p60, %p61
      %p64 = scmp.ne.s32.totalorder %s49, %s63
      %p65 = scmp.eq.s32.totalorder %s18, 0
      %p66 = por %p64, %p65
      %s68 = sadd.s32 %s67, 1
      %p71 = scmp.eq.s32.totalorder %s12, 1
      %p72 = scmp.ne.s32.totalorder %s67, %s69
      %p73 = scmp.eq.s32.totalorder %s12, 0
      %p74 = por %p72, %p73
      %p75 = scmp.ne.s32.totalorder %s67, %s69
      %p76 = scmp.eq.s32.totalorder %s17, 1
      %p77 = por %p75, %p76
      %p78 = scmp.ne.s32.totalorder %s69, %s70
      %p79 = scmp.eq.s32.totalorder %s17, 0
      %p80 = por %p78, %p79
      %p81 = scmp.ne.s32.totalorder %s69, %s70
      %p82 = scmp.eq.s32.totalorder %s18, 1
      %p83 = por %p81, %p82
      %p85 = scmp.ne.s32.totalorder %s70, %s84
      %p86 = scmp.eq.s32.totalorder %s18, 0
      %p87 = por %p85, %p86
      %s88 = ssub.s32 %s12, %s19
      %p89 = scmp.eq.s32.totalorder %s88, 0
      %s91 = sadd.s32 %s90, 1
      %s92 = scalar_select %p89, %s90, %s91
      %p95 = pneg %p89
      %p96 = scmp.eq.s32.totalorder %s12, 1
      %p97 = por %p95, %p96
      %p98 = scmp.ne.s32.totalorder %s90, %s93
      %p99 = scmp.eq.s32.totalorder %s12, 0
      %p100 = por %p98, %p99
      %p101 = scmp.ne.s32.totalorder %s90, %s93
      %p102 = scmp.eq.s32.totalorder %s17, 1
      %p103 = por %p101, %p102
      %p104 = scmp.ne.s32.totalorder %s93, %s94
      %p105 = scmp.eq.s32.totalorder %s17, 0
      %p106 = por %p104, %p105
      %p107 = scmp.ne.s32.totalorder %s93, %s94
      %p108 = scmp.eq.s32.totalorder %s18, 1
      %p109 = por %p107, %p108
      %p111 = scmp.ne.s32.totalorder %s94, %s110
      %p112 = scmp.eq.s32.totalorder %s18, 0
      %p113 = por %p111, %p112
      %p114 = scmp.le.s32.totalorder 1, %s12
      %p115 = scmp.lt.s32.totalorder %s12, 3
      %p116 = pnand %p114, %p115
      %p117 = pneg %p116
      // Predicated region
      $region9: #{_forward.3} parent=5 // pred_check
        _
      $region10: #{_forward.3} parent=5 // pred_check_branch
        %119 = sbr.rel (%p116) target = $region12
      $region11: #{_forward.3} parent=5 // pred_region
        %s120 = ssub.s32 %s12, 1
        // Predicated region
        $region13: #{_forward.3} parent=11 // pred_check
          %p121 = pneg %p59
        $region14: #{_forward.3} parent=11 // pred_check_branch
          %123 = sbr.rel (%p121) target = $region16
        $region15: #{_forward.3} parent=11 // pred_region
          _
        $region16: #{_forward.3} parent=11 // pred_fallthru
          _
        // Predicated region
        $region17: #{_forward.3} parent=11 // pred_check
          %p124 = pneg %p80
        $region18: #{_forward.3} parent=11 // pred_check_branch
          %126 = sbr.rel (%p124) target = $region20
        $region19: #{_forward.3} parent=11 // pred_region
          _
        $region20: #{_forward.3} parent=11 // pred_fallthru
          _
      $region12: #{_forward.3} parent=5 // pred_fallthru
        _
      %p127 = scmp.lt.s32.totalorder %s12, 2
      // Predicated region
      $region21: #{_forward.3} parent=5 // pred_check
        %p128 = pneg %p127
      $region22: #{_forward.3} parent=5 // pred_check_branch
        %130 = sbr.rel (%p128) target = $region24
      $region23: #{_forward.3} parent=5 // pred_region
        // Predicated region
        $region25: #{_forward.3} parent=23 // pred_check
          %p131 = pneg %p32
        $region26: #{_forward.3} parent=23 // pred_check_branch
          %133 = sbr.rel (%p131) target = $region28
        $region27: #{_forward.3} parent=23 // pred_region
          %p134 = scmp.lt.s32.totalorder %s12, 1
          %s135 = scalar_select %p134, %s12, 1
          %s136 = smul.addr %s135, 2
          %s137 = smul.addr %s136, 8
          %s138 = scalar_lea.vmem %s0, %s137
        $region28: #{_forward.3} parent=23 // pred_fallthru
          _
      $region24: #{_forward.3} parent=5 // pred_fallthru
        _
      %p139 = scmp.le.s32.totalorder 1, %s12
      %p140 = scmp.lt.s32.totalorder %s12, 3
      %p141 = pnand %p139, %p140
      %p142 = pneg %p141
      // Predicated region
      $region29: #{_forward.3} parent=5 // pred_check
        _
      $region30: #{_forward.3} parent=5 // pred_check_branch
        %144 = sbr.rel (%p141) target = $region32
      $region31: #{_forward.3} parent=5 // pred_region
        %s145 = ssub.s32 %s12, 1
        %p146 = scmp.lt.s32.totalorder %s17, 1
        %s147 = scalar_select %p146, %s17, 1
        %s148 = smul.addr %s147, 2
        %s149 = smul.addr %s148, 8
        %s150 = scalar_lea.vmem %s0, %s149
        %p151 = pneg %p38
        %p152 = pneg %p35
        %p153 = pneg %p59
        %p154 = pneg %p56
        %p155 = pneg %p80
        %p156 = pneg %p77
        %p157 = pneg %p106
        %p158 = pneg %p103
        %s159 = sand.u32 %s93, 1
        %s160 = scalar_lea.sflag [#allocation3], %s159
        %s161 = sand.u32 %s93, 1
        %s162 = smul.addr %s161, 8
        %s163 = scalar_lea.vmem [#allocation2], %s162
        %p164 = scmp.lt.s32.totalorder %s17, 1
        %s165 = scalar_select %p164, %s17, 1
        %s166 = smul.addr %s165, 2
        %s167 = smul.addr %s166, 8
        %s168 = scalar_lea.vmem %s0, %s167
        %v169 = vld [vmem:[%s168] sm:$0xff]
        %v170 = vld [vmem:[%s168 + $0x8] sm:$0xff]
        %v171 = vpack.c.bf16 %v169, %v169
        %v172 = vpack.c.bf16 %v170, %v170
        %v173 = vld [vmem:[%s1] sm:$0xf]
        %v174 = vld [vmem:[%s1 + $0x4] sm:$0xf]
        %v175 = vld [vmem:[%s1 + $0x8] sm:$0xf]
        %v176 = vld [vmem:[%s1 + $0xc] sm:$0xf]
        %v177 = vld [vmem:[%s1 + $0x10] sm:$0xf]
        %v178 = vld [vmem:[%s1 + $0x14] sm:$0xf]
        %v179 = vld [vmem:[%s1 + $0x18] sm:$0xf]
        %v180 = vld [vmem:[%s1 + $0x1c] sm:$0xf]
        %v181 = vld [vmem:[%s1 + $0x20] sm:$0xf]
        %v182 = vld [vmem:[%s1 + $0x24] sm:$0xf]
        %v183 = vld [vmem:[%s1 + $0x28] sm:$0xf]
        %v184 = vld [vmem:[%s1 + $0x2c] sm:$0xf]
        %v185 = vld [vmem:[%s1 + $0x30] sm:$0xf]
        %v186 = vld [vmem:[%s1 + $0x34] sm:$0xf]
        %v187 = vld [vmem:[%s1 + $0x38] sm:$0xf]
        %v188 = vld [vmem:[%s1 + $0x3c] sm:$0xf]
        %v189 = vld [vmem:[%s1 + $0x40] sm:$0xf]
        %v190 = vld [vmem:[%s1 + $0x44] sm:$0xf]
        %v191 = vld [vmem:[%s1 + $0x48] sm:$0xf]
        %v192 = vld [vmem:[%s1 + $0x4c] sm:$0xf]
        %v193 = vld [vmem:[%s1 + $0x50] sm:$0xf]
        %v194 = vld [vmem:[%s1 + $0x54] sm:$0xf]
        %v195 = vld [vmem:[%s1 + $0x58] sm:$0xf]
        %v196 = vld [vmem:[%s1 + $0x5c] sm:$0xf]
        %v197 = vld [vmem:[%s1 + $0x60] sm:$0xf]
        %v198 = vld [vmem:[%s1 + $0x64] sm:$0xf]
        %v199 = vld [vmem:[%s1 + $0x68] sm:$0xf]
        %v200 = vld [vmem:[%s1 + $0x6c] sm:$0xf]
        %v201 = vld [vmem:[%s1 + $0x70] sm:$0xf]
        %v202 = vld [vmem:[%s1 + $0x74] sm:$0xf]
        %v203 = vld [vmem:[%s1 + $0x78] sm:$0xf]
        %v204 = vld [vmem:[%s1 + $0x7c] sm:$0xf]
        %v205 = vld [vmem:[%s2] sm:$0x7]
        %v206 = vperm.slane %v205, 0
        %v239 = vunpack.c.l.b16 %v173
        %v240 = vunpack.c.l.b16 %v174
        %v241 = vunpack.c.l.b16 %v175
        %v242 = vunpack.c.l.b16 %v176
        %v243 = vunpack.c.l.b16 %v177
        %v244 = vunpack.c.l.b16 %v178
        %v245 = vunpack.c.l.b16 %v179
        %v246 = vunpack.c.l.b16 %v180
        %v247 = vunpack.c.l.b16 %v181
        %v248 = vunpack.c.l.b16 %v182
        %v249 = vunpack.c.l.b16 %v183
        %v250 = vunpack.c.l.b16 %v184
        %v251 = vunpack.c.l.b16 %v185
        %v252 = vunpack.c.l.b16 %v186
        %v253 = vunpack.c.l.b16 %v187
        %v254 = vunpack.c.l.b16 %v188
        %v255 = vunpack.c.l.b16 %v189
        %v256 = vunpack.c.l.b16 %v190
        %v257 = vunpack.c.l.b16 %v191
        %v258 = vunpack.c.l.b16 %v192
        %v259 = vunpack.c.l.b16 %v193
        %v260 = vunpack.c.l.b16 %v194
        %v261 = vunpack.c.l.b16 %v195
        %v262 = vunpack.c.l.b16 %v196
        %v263 = vunpack.c.l.b16 %v197
        %v264 = vunpack.c.l.b16 %v198
        %v265 = vunpack.c.l.b16 %v199
        %v266 = vunpack.c.l.b16 %v200
        %v267 = vunpack.c.l.b16 %v201
        %v268 = vunpack.c.l.b16 %v202
        %v269 = vunpack.c.l.b16 %v203
        %v270 = vunpack.c.l.b16 %v204
        %v271 = vpack.c.b16 %v240, %v239
        %v272 = vpack.c.b16 %v242, %v241
        %v273 = vpack.c.b16 %v244, %v243
        %v274 = vpack.c.b16 %v246, %v245
        %v275 = vpack.c.b16 %v248, %v247
        %v276 = vpack.c.b16 %v250, %v249
        %v277 = vpack.c.b16 %v252, %v251
        %v278 = vpack.c.b16 %v254, %v253
        %v279 = vpack.c.b16 %v256, %v255
        %v280 = vpack.c.b16 %v258, %v257
        %v281 = vpack.c.b16 %v260, %v259
        %v282 = vpack.c.b16 %v262, %v261
        %v283 = vpack.c.b16 %v264, %v263
        %v284 = vpack.c.b16 %v266, %v265
        %v285 = vpack.c.b16 %v268, %v267
        %v286 = vpack.c.b16 %v270, %v269
        %303 = vmatpush.bf16.msra.mxu0 %v278
        %304 = vmatpush.bf16.msra.mxu0 %v277
        %305 = vmatpush.bf16.msra.mxu0 %v276
        %306 = vmatpush.bf16.msra.mxu0 %v275
        %307 = vmatpush.bf16.msra.mxu0 %v274
        %308 = vmatpush.bf16.msra.mxu0 %v273
        %309 = vmatpush.bf16.msra.mxu0 %v272
        %310 = vmatpush.bf16.msra.mxu0 %v271
        %311 = vmatmul.bf16.gmra.mxu0 %v171
        %v312 = vpop.f32.mrf.mxu0
        %v313 = vadd.f32 %v206, %v312
        %v314 = vpop.f32.mrf.mxu0
        %315 = vdwg.mxu0
        %316 = vmatpush.bf16.msra.mxu0 %v286
        %317 = vmatpush.bf16.msra.mxu0 %v285
        %318 = vmatpush.bf16.msra.mxu0 %v284
        %319 = vmatpush.bf16.msra.mxu0 %v283
        %320 = vmatpush.bf16.msra.mxu0 %v282
        %321 = vmatpush.bf16.msra.mxu0 %v281
        %322 = vmatpush.bf16.msra.mxu0 %v280
        %323 = vmatpush.bf16.msra.mxu0 %v279
        %324 = vmatmul.bf16.gmra.mxu0 %v172
        %v325 = vpop.f32.mrf.mxu0
        %v326 = vadd.f32 %v313, %v325
        %v327 = vpop.f32.mrf.mxu0
        %328 = vdwg.mxu0
        %329 = vadd.xlane.f32.xlu0 %v326
        %v330 = vpop.xlane.xlu0 %329
        %v331 = vmul.f32 %v330, 0.0078125
        %v332 = vsub.f32 %v326, %v331
        %v333 = vmul.f32 %v332, %v332
        %334 = vadd.xlane.f32.xlu0 %v333
        %v335 = vpop.xlane.xlu0 %334
        %v336 = vmul.f32 %v335, 0.0078125
        %v337 = vadd.f32 %v336, 1e-05
        %v338 = vrsqrt.pop %v337
        %v339 = vmul.f32 %v338, %v337
        %v340 = vmul.f32 %v339, %v338
        %v341 = vmul.f32 0.5, %v340
        %v342 = vsub.f32 1.5, %v341
        %v343 = vmul.f32 %v338, %v342
        %vm344 = vweird.f32 %v337
        %vm345 = vweird.f32 %v338
        %vm346 = vmor %vm344, %vm345
        %v347 = vsel %vm346, %v338, %v343
        %v348 = vmul.f32 %v332, %v347
        %v349 = vperm.slane %v205, 1
        %v350 = vmul.f32 %v348, %v349
        %v351 = vperm.slane %v205, 2
        %v352 = vadd.f32 %v350, %v351
        %353 = vst [vmem:[%s163] sm:$0xff] %v352
        %s354 = sand.u32 %s93, 1
        %s355 = scalar_lea.sflag [#allocation3], %s354
        %s356 = sand.u32 %s93, 1
        %s357 = smul.addr %s356, 8
        %s358 = scalar_lea.vmem [#allocation2], %s357
        // Predicated region
        $region33: #{_forward.3} parent=31 // pred_check
          %p359 = pneg %p103
        $region34: #{_forward.3} parent=31 // pred_check_branch
          %361 = sbr.rel (%p359) target = $region36
        $region35: #{_forward.3} parent=31 // pred_region
          %363 = vsyncadd %s355, 0
          %s364 = smul.addr %s17, 8
          %s365 = scalar_lea.hbm %s3, %s364
          %s367 = sshll.u32 %s358, 4
          %s368 = int_to_ptr.vmem [resolvable:$true] %s367
          %s369 = sshll.u32 %s365, 4
          %s370 = int_to_ptr.hbm [resolvable:$true] %s369
          %372 = dma.vmem_to_hbm [thread:$0]  %s368, 128, %s370, %s355
        $region36: #{_forward.3} parent=31 // pred_fallthru
          _
      $region32: #{_forward.3} parent=5 // pred_fallthru
        _
      %p373 = scmp.le.s32.totalorder 2, %s12
      // Predicated region
      $region37: #{_forward.3} parent=5 // pred_check
        %p374 = pneg %p373
      $region38: #{_forward.3} parent=5 // pred_check_branch
        %376 = sbr.rel (%p374) target = $region40
      $region39: #{_forward.3} parent=5 // pred_region
        %s377 = ssub.s32 %s12, 2
        // Predicated region
        $region41: #{_forward.3} parent=39 // pred_check
          %p378 = pneg %p109
        $region42: #{_forward.3} parent=39 // pred_check_branch
          %380 = sbr.rel (%p378) target = $region44
        $region43: #{_forward.3} parent=39 // pred_region
          %s381 = sand.u32 %s94, 1
          %s382 = scalar_lea.sflag [#allocation3], %s381
          %s383 = sand.u32 %s94, 1
          %s384 = smul.addr %s383, 8
          %s385 = scalar_lea.vmem [#allocation2], %s384
          %387 = dma.done %s382, 128
        $region44: #{_forward.3} parent=39 // pred_fallthru
          _
      $region40: #{_forward.3} parent=5 // pred_fallthru
        _
    $region6: #{_forward.3} parent=1 // loop_footer
      %s16 = sadd.s32 1, %s12
    $region7: #{_forward.3} parent=1 // loop_footer_branch
      %11 = sbr.rel target = $region3
    $region8: #{_forward.3} parent=1 // loop_exit
      _
    %388 = vsyncpa [#allocation3], 1
    %s389 = scalar_lea.sflag [#allocation3], 1
    %390 = vsyncpa %s389, 1

// kernel: _forward.5
$region0: #{_forward.5}
  #allocation0 [shape = 'u32[]', space=smem, size = 0x4, offset = 0x4, fixed_abs, tag = 'smem constant byte address 0x4 - core index']
  #allocation1 [shape = 'u32[72,128]{1,0:T(1,128)}', space=vmem, size = 0x9000, scoped, tag = 'internal scratch']
  %s0 = inlined_call_operand.hbm [shape: f32[16,256], index: 0, kind: input, shape index: {}]
  %s1 = inlined_call_operand.hbm [shape: bf16[256,128], index: 1, kind: input, shape index: {}]
  %s2 = inlined_call_operand.vmem [shape: f32[3,128], index: 2, kind: input, shape index: {}]
  %s3 = inlined_call_operand.hbm [shape: f32[16,128], index: 3, kind: output, shape index: {}]
  %s4 = sld [smem:[#allocation0]]
  $region53: #{_forward.5} parent=0
    _
  %s6 = ssub.s32 1, %s4
  %s7 = scalar_select 0, %s6, %s4
  $region1: #{_forward.5} parent=0
    #allocation2 [shape = 'u8[16384]{0}', space=vmem, size = 0x4000, scoped, tag = 'input window, operand 0']
    #allocation3 [shape = 's32[2]{0}', space=sflag, size = 0x8, scoped, tag = 'scoped memory for _forward.5']
    #allocation4 [shape = 's32[2]{0}', space=sflag, size = 0x8, scoped, tag = 'scoped memory for _forward.5']
    #allocation5 [shape = 'u8[65536]{0}', space=vmem, size = 0x10000, scoped, tag = 'input window, operand 1, single buffered']
    #allocation6 [shape = 's32[1]{0}', space=sflag, size = 0x4, scoped, tag = 'scoped memory for _forward.5']
    #allocation7 [shape = 'u8[8192]{0}', space=vmem, size = 0x2000, scoped, tag = 'output window, operand 0']
    %8 = vsyncpa [#allocation3], 0
    %s9 = scalar_lea.sflag [#allocation3], 1
    %10 = vsyncpa %s9, 0
    %11 = vsyncpa [#allocation6], 0
    %12 = vsyncpa [#allocation4], 0
    %s13 = scalar_lea.sflag [#allocation4], 1
    %14 = vsyncpa %s13, 0
    loop: start=0, step=1, limit=4
    $region2: #{_forward.5} parent=1 // loop_pre_header
      _
    $region3: #{_forward.5} parent=1 // loop_header
      %s16 = sphi 0, %s20
      %p17 = scmp.ge.s32.totalorder %s16, 4
      %s26 = sphi 0, %s28
      %s29 = sphi 0, %s26
      %s30 = sphi 0, %s29
      %s46 = sphi 0, %s30
      %s50 = sphi 0, %s50
      %s52 = sphi 0, %s50
      %s53 = sphi 0, %s52
      %s67 = sphi 0, %s53
      %s71 = sphi 0, %s71
      %s73 = sphi 0, %s71
      %s74 = sphi 0, %s73
      %s88 = sphi 0, %s74
      %s94 = sphi 0, %s96
      %s97 = sphi 0, %s94
      %s98 = sphi 0, %s97
      %s114 = sphi 0, %s98
    $region4: #{_forward.5} parent=1 // loop_header_branch
      %19 = sbr.rel (%p17) target = $region8
    $region5: #{_forward.5} parent=1 // loop_body
      %s21 = ssub.s32 %s16, 1
      %s22 = ssub.s32 %s16, 2
      %s23 = sadd.s32 %s16, 1
      %s24 = ssub.s32 %s16, %s23
      %p25 = scmp.eq.s32.totalorder %s24, 0
      %s27 = sadd.s32 %s26, 1
      %s28 = scalar_select %p25, %s26, %s27
      %p31 = pneg %p25
      %p32 = scmp.eq.s32.totalorder %s16, 1
      %p33 = por %p31, %p32
      %p34 = scmp.ne.s32.totalorder %s26, %s29
      %p35 = scmp.eq.s32.totalorder %s16, 0
      %p36 = por %p34, %p35
      %p37 = scmp.ne.s32.totalorder %s26, %s29
      %p38 = scmp.eq.s32.totalorder %s21, 1
      %p39 = por %p37, %p38
      %p40 = scmp.ne.s32.totalorder %s29, %s30
      %p41 = scmp.eq.s32.totalorder %s21, 0
      %p42 = por %p40, %p41
      %p43 = scmp.ne.s32.totalorder %s29, %s30
      %p44 = scmp.eq.s32.totalorder %s22, 1
      %p45 = por %p43, %p44
      %p47 = scmp.ne.s32.totalorder %s30, %s46
      %p48 = scmp.eq.s32.totalorder %s22, 0
      %p49 = por %p47, %p48
      %s51 = sadd.s32 %s50, 1
      %p54 = scmp.eq.s32.totalorder %s16, 1
      %p55 = scmp.ne.s32.totalorder %s50, %s52
      %p56 = scmp.eq.s32.totalorder %s16, 0
      %p57 = por %p55, %p56
      %p58 = scmp.ne.s32.totalorder %s50, %s52
      %p59 = scmp.eq.s32.totalorder %s21, 1
      %p60 = por %p58, %p59
      %p61 = scmp.ne.s32.totalorder %s52, %s53
      %p62 = scmp.eq.s32.totalorder %s21, 0
      %p63 = por %p61, %p62
      %p64 = scmp.ne.s32.totalorder %s52, %s53
      %p65 = scmp.eq.s32.totalorder %s22, 1
      %p66 = por %p64, %p65
      %p68 = scmp.ne.s32.totalorder %s53, %s67
      %p69 = scmp.eq.s32.totalorder %s22, 0
      %p70 = por %p68, %p69
      %s72 = sadd.s32 %s71, 1
      %p75 = scmp.eq.s32.totalorder %s16, 1
      %p76 = scmp.ne.s32.totalorder %s71, %s73
      %p77 = scmp.eq.s32.totalorder %s16, 0
      %p78 = por %p76, %p77
      %p79 = scmp.ne.s32.totalorder %s71, %s73
      %p80 = scmp.eq.s32.totalorder %s21, 1
      %p81 = por %p79, %p80
      %p82 = scmp.ne.s32.totalorder %s73, %s74
      %p83 = scmp.eq.s32.totalorder %s21, 0
      %p84 = por %p82, %p83
      %p85 = scmp.ne.s32.totalorder %s73, %s74
      %p86 = scmp.eq.s32.totalorder %s22, 1
      %p87 = por %p85, %p86
      %p89 = scmp.ne.s32.totalorder %s74, %s88
      %p90 = scmp.eq.s32.totalorder %s22, 0
      %p91 = por %p89, %p90
      %s92 = ssub.s32 %s16, %s23
      %p93 = scmp.eq.s32.totalorder %s92, 0
      %s95 = sadd.s32 %s94, 1
      %s96 = scalar_select %p93, %s94, %s95
      %p99 = pneg %p93
      %p100 = scmp.eq.s32.totalorder %s16, 1
      %p101 = por %p99, %p100
      %p102 = scmp.ne.s32.totalorder %s94, %s97
      %p103 = scmp.eq.s32.totalorder %s16, 0
      %p104 = por %p102, %p103
      %p105 = scmp.ne.s32.totalorder %s94, %s97
      %p106 = scmp.eq.s32.totalorder %s21, 1
      %p107 = por %p105, %p106
      %p108 = scmp.ne.s32.totalorder %s97, %s98
      %p109 = scmp.eq.s32.totalorder %s21, 0
      %p110 = por %p108, %p109
      %p111 = scmp.ne.s32.totalorder %s97, %s98
      %p112 = scmp.eq.s32.totalorder %s22, 1
      %p113 = por %p111, %p112
      %p115 = scmp.ne.s32.totalorder %s98, %s114
      %p116 = scmp.eq.s32.totalorder %s22, 0
      %p117 = por %p115, %p116
      %p118 = scmp.le.s32.totalorder 1, %s16
      %p119 = scmp.lt.s32.totalorder %s16, 3
      %p120 = pnand %p118, %p119
      %p121 = pneg %p120
      // Predicated region
      $region9: #{_forward.5} parent=5 // pred_check
        _
      $region10: #{_forward.5} parent=5 // pred_check_branch
        %123 = sbr.rel (%p120) target = $region12
      $region11: #{_forward.5} parent=5 // pred_region
        %s124 = ssub.s32 %s16, 1
        // Predicated region
        $region13: #{_forward.5} parent=11 // pred_check
          %p125 = pneg %p63
        $region14: #{_forward.5} parent=11 // pred_check_branch
          %127 = sbr.rel (%p125) target = $region16
        $region15: #{_forward.5} parent=11 // pred_region
          %129 = vsyncadd [#allocation6], 0
          %s130 = sshll.u32 %s1, 4
          %s131 = int_to_ptr.hbm [resolvable:$true] %s130
          %s132 = sshll.u32 [#allocation5], 4
          %s133 = int_to_ptr.vmem [resolvable:$true] %s132
          %138 = dma.hbm_to_vmem [thread:$0]  %s131, 2048, %s133, [#allocation6], 64, 64, 4
        $region16: #{_forward.5} parent=11 // pred_fallthru
          _
        // Predicated region
        $region17: #{_forward.5} parent=11 // pred_check
          %p139 = pneg %p84
        $region18: #{_forward.5} parent=11 // pred_check_branch
          %141 = sbr.rel (%p139) target = $region20
        $region19: #{_forward.5} parent=11 // pred_region
          _
        $region20: #{_forward.5} parent=11 // pred_fallthru
          _
      $region12: #{_forward.5} parent=5 // pred_fallthru
        _
      %p142 = scmp.lt.s32.totalorder %s16, 2
      // Predicated region
      $region21: #{_forward.5} parent=5 // pred_check
        %p143 = pneg %p142
      $region22: #{_forward.5} parent=5 // pred_check_branch
        %145 = sbr.rel (%p143) target = $region24
      $region23: #{_forward.5} parent=5 // pred_region
        // Predicated region
        $region25: #{_forward.5} parent=23 // pred_check
          %p146 = pneg %p36
        $region26: #{_forward.5} parent=23 // pred_check_branch
          %148 = sbr.rel (%p146) target = $region28
        $region27: #{_forward.5} parent=23 // pred_region
          %s149 = sand.u32 %s26, 1
          %s150 = scalar_lea.sflag [#allocation3], %s149
          %s151 = sand.u32 %s26, 1
          %s152 = smul.addr %s151, 16
          %s153 = scalar_lea.vmem [#allocation2], %s152
          %155 = vsyncadd %s150, 0
          %s156 = smul.addr %s16, 2
          %s157 = smul.addr %s156, 8
          %s158 = scalar_lea.hbm %s0, %s157
          %s160 = sshll.u32 %s158, 4
          %s161 = int_to_ptr.hbm [resolvable:$true] %s160
          %s162 = sshll.u32 %s153, 4
          %s163 = int_to_ptr.vmem [resolvable:$true] %s162
          %165 = dma.hbm_to_vmem [thread:$0]  %s161, 256, %s163, %s150
        $region28: #{_forward.5} parent=23 // pred_fallthru
          _
      $region24: #{_forward.5} parent=5 // pred_fallthru
        _
      %p166 = scmp.le.s32.totalorder 1, %s16
      %p167 = scmp.lt.s32.totalorder %s16, 3
      %p168 = pnand %p166, %p167
      %p169 = pneg %p168
      // Predicated region
      $region29: #{_forward.5} parent=5 // pred_check
        _
      $region30: #{_forward.5} parent=5 // pred_check_branch
        %171 = sbr.rel (%p168) target = $region32
      $region31: #{_forward.5} parent=5 // pred_region
        %s172 = ssub.s32 %s16, 1
        %s173 = sand.u32 %s29, 1
        %s174 = scalar_lea.sflag [#allocation3], %s173
        %s175 = sand.u32 %s29, 1
        %s176 = smul.addr %s175, 16
        %s177 = scalar_lea.vmem [#allocation2], %s176
        // Predicated region
        $region33: #{_forward.5} parent=31 // pred_check
          %p178 = pneg %p42
        $region34: #{_forward.5} parent=31 // pred_check_branch
          %180 = sbr.rel (%p178) target = $region36
        $region35: #{_forward.5} parent=31 // pred_region
          %182 = dma.done %s174, 256
        $region36: #{_forward.5} parent=31 // pred_fallthru
          _
        // Predicated region
        $region37: #{_forward.5} parent=31 // pred_check
          %p183 = pneg %p63
        $region38: #{_forward.5} parent=31 // pred_check_branch
          %185 = sbr.rel (%p183) target = $region40
        $region39: #{_forward.5} parent=31 // pred_region
          %187 = dma.done [#allocation6], 2048
        $region40: #{_forward.5} parent=31 // pred_fallthru
          _
        %s188 = sand.u32 %s29, 1
        %s189 = scalar_lea.sflag [#allocation3], %s188
        %s190 = sand.u32 %s29, 1
        %s191 = smul.addr %s190, 16
        %s192 = scalar_lea.vmem [#allocation2], %s191
        %p193 = pneg %p42
        %p194 = pneg %p39
        %p195 = pneg %p63
        %p196 = pneg %p60
        %p197 = pneg %p84
        %p198 = pneg %p81
        %p199 = pneg %p110
        %p200 = pneg %p107
        %s201 = sand.u32 %s97, 1
        %s202 = scalar_lea.sflag [#allocation4], %s201
        %s203 = sand.u32 %s97, 1
        %s204 = smul.addr %s203, 8
        %s205 = scalar_lea.vmem [#allocation7], %s204
        %v206 = vld [vmem:[%s177] sm:$0xff]
        %v207 = vld [vmem:[%s177 + $0x8] sm:$0xff]
        %v208 = vpack.c.bf16 %v206, %v206
        %v209 = vpack.c.bf16 %v207, %v207
        %v210 = vld [vmem:[#allocation5] sm:$0xf]
        %v211 = vld [vmem:[#allocation5 + $0x4] sm:$0xf]
        %v212 = vld [vmem:[#allocation5 + $0x8] sm:$0xf]
        %v213 = vld [vmem:[#allocation5 + $0xc] sm:$0xf]
        %v214 = vld [vmem:[#allocation5 + $0x10] sm:$0xf]
        %v215 = vld [vmem:[#allocation5 + $0x14] sm:$0xf]
        %v216 = vld [vmem:[#allocation5 + $0x18] sm:$0xf]
        %v217 = vld [vmem:[#allocation5 + $0x1c] sm:$0xf]
        %v218 = vld [vmem:[#allocation5 + $0x20] sm:$0xf]
        %v219 = vld [vmem:[#allocation5 + $0x24] sm:$0xf]
        %v220 = vld [vmem:[#allocation5 + $0x28] sm:$0xf]
        %v221 = vld [vmem:[#allocation5 + $0x2c] sm:$0xf]
        %v222 = vld [vmem:[#allocation5 + $0x30] sm:$0xf]
        %v223 = vld [vmem:[#allocation5 + $0x34] sm:$0xf]
        %v224 = vld [vmem:[#allocation5 + $0x38] sm:$0xf]
        %v225 = vld [vmem:[#allocation5 + $0x3c] sm:$0xf]
        %v226 = vld [vmem:[#allocation5 + $0x40] sm:$0xf]
        %v227 = vld [vmem:[#allocation5 + $0x44] sm:$0xf]
        %v228 = vld [vmem:[#allocation5 + $0x48] sm:$0xf]
        %v229 = vld [vmem:[#allocation5 + $0x4c] sm:$0xf]
        %v230 = vld [vmem:[#allocation5 + $0x50] sm:$0xf]
        %v231 = vld [vmem:[#allocation5 + $0x54] sm:$0xf]
        %v232 = vld [vmem:[#allocation5 + $0x58] sm:$0xf]
        %v233 = vld [vmem:[#allocation5 + $0x5c] sm:$0xf]
        %v234 = vld [vmem:[#allocation5 + $0x60] sm:$0xf]
        %v235 = vld [vmem:[#allocation5 + $0x64] sm:$0xf]
        %v236 = vld [vmem:[#allocation5 + $0x68] sm:$0xf]
        %v237 = vld [vmem:[#allocation5 + $0x6c] sm:$0xf]
        %v238 = vld [vmem:[#allocation5 + $0x70] sm:$0xf]
        %v239 = vld [vmem:[#allocation5 + $0x74] sm:$0xf]
        %v240 = vld [vmem:[#allocation5 + $0x78] sm:$0xf]
        %v241 = vld [vmem:[#allocation5 + $0x7c] sm:$0xf]
        %v242 = vld [vmem:[%s2] sm:$0x7]
        %v243 = vperm.slane %v242, 0
        %v276 = vunpack.c.l.b16 %v210
        %v277 = vunpack.c.l.b16 %v211
        %v278 = vunpack.c.l.b16 %v212
        %v279 = vunpack.c.l.b16 %v213
        %v280 = vunpack.c.l.b16 %v214
        %v281 = vunpack.c.l.b16 %v215
        %v282 = vunpack.c.l.b16 %v216
        %v283 = vunpack.c.l.b16 %v217
        %v284 = vunpack.c.l.b16 %v218
        %v285 = vunpack.c.l.b16 %v219
        %v286 = vunpack.c.l.b16 %v220
        %v287 = vunpack.c.l.b16 %v221
        %v288 = vunpack.c.l.b16 %v222
        %v289 = vunpack.c.l.b16 %v223
        %v290 = vunpack.c.l.b16 %v224
        %v291 = vunpack.c.l.b16 %v225
        %v292 = vunpack.c.l.b16 %v226
        %v293 = vunpack.c.l.b16 %v227
        %v294 = vunpack.c.l.b16 %v228
        %v295 = vunpack.c.l.b16 %v229
        %v296 = vunpack.c.l.b16 %v230
        %v297 = vunpack.c.l.b16 %v231
        %v298 = vunpack.c.l.b16 %v232
        %v299 = vunpack.c.l.b16 %v233
        %v300 = vunpack.c.l.b16 %v234
        %v301 = vunpack.c.l.b16 %v235
        %v302 = vunpack.c.l.b16 %v236
        %v303 = vunpack.c.l.b16 %v237
        %v304 = vunpack.c.l.b16 %v238
        %v305 = vunpack.c.l.b16 %v239
        %v306 = vunpack.c.l.b16 %v240
        %v307 = vunpack.c.l.b16 %v241
        %v308 = vpack.c.b16 %v277, %v276
        %v309 = vpack.c.b16 %v279, %v278
        %v310 = vpack.c.b16 %v281, %v280
        %v311 = vpack.c.b16 %v283, %v282
        %v312 = vpack.c.b16 %v285, %v284
        %v313 = vpack.c.b16 %v287, %v286
        %v314 = vpack.c.b16 %v289, %v288
        %v315 = vpack.c.b16 %v291, %v290
        %v316 = vpack.c.b16 %v293, %v292
        %v317 = vpack.c.b16 %v295, %v294
        %v318 = vpack.c.b16 %v297, %v296
        %v319 = vpack.c.b16 %v299, %v298
        %v320 = vpack.c.b16 %v301, %v300
        %v321 = vpack.c.b16 %v303, %v302
        %v322 = vpack.c.b16 %v305, %v304
        %v323 = vpack.c.b16 %v307, %v306
        %340 = vmatpush.bf16.msra.mxu0 %v315
        %341 = vmatpush.bf16.msra.mxu0 %v314
        %342 = vmatpush.bf16.msra.mxu0 %v313
        %343 = vmatpush.bf16.msra.mxu0 %v312
        %344 = vmatpush.bf16.msra.mxu0 %v311
        %345 = vmatpush.bf16.msra.mxu0 %v310
        %346 = vmatpush.bf16.msra.mxu0 %v309
        %347 = vmatpush.bf16.msra.mxu0 %v308
        %348 = vmatmul.bf16.gmra.mxu0 %v208
        %v349 = vpop.f32.mrf.mxu0
        %v350 = vadd.f32 %v243, %v349
        %v351 = vpop.f32.mrf.mxu0
        %352 = vdwg.mxu0
        %353 = vmatpush.bf16.msra.mxu0 %v323
        %354 = vmatpush.bf16.msra.mxu0 %v322
        %355 = vmatpush.bf16.msra.mxu0 %v321
        %356 = vmatpush.bf16.msra.mxu0 %v320
        %357 = vmatpush.bf16.msra.mxu0 %v319
        %358 = vmatpush.bf16.msra.mxu0 %v318
        %359 = vmatpush.bf16.msra.mxu0 %v317
        %360 = vmatpush.bf16.msra.mxu0 %v316
        %361 = vmatmul.bf16.gmra.mxu0 %v209
        %v362 = vpop.f32.mrf.mxu0
        %v363 = vadd.f32 %v350, %v362
        %v364 = vpop.f32.mrf.mxu0
        %365 = vdwg.mxu0
        %366 = vadd.xlane.f32.xlu0 %v363
        %v367 = vpop.xlane.xlu0 %366
        %v368 = vmul.f32 %v367, 0.0078125
        %v369 = vsub.f32 %v363, %v368
        %v370 = vmul.f32 %v369, %v369
        %371 = vadd.xlane.f32.xlu0 %v370
        %v372 = vpop.xlane.xlu0 %371
        %v373 = vmul.f32 %v372, 0.0078125
        %v374 = vadd.f32 %v373, 1e-05
        %v375 = vrsqrt.pop %v374
        %v376 = vmul.f32 %v375, %v374
        %v377 = vmul.f32 %v376, %v375
        %v378 = vmul.f32 0.5, %v377
        %v379 = vsub.f32 1.5, %v378
        %v380 = vmul.f32 %v375, %v379
        %vm381 = vweird.f32 %v374
        %vm382 = vweird.f32 %v375
        %vm383 = vmor %vm381, %vm382
        %v384 = vsel %vm383, %v375, %v380
        %v385 = vmul.f32 %v369, %v384
        %v386 = vperm.slane %v242, 1
        %v387 = vmul.f32 %v385, %v386
        %v388 = vperm.slane %v242, 2
        %v389 = vadd.f32 %v387, %v388
        %390 = vst [vmem:[%s205] sm:$0xff] %v389
        %s391 = sand.u32 %s97, 1
        %s392 = scalar_lea.sflag [#allocation4], %s391
        %s393 = sand.u32 %s97, 1
        %s394 = smul.addr %s393, 8
        %s395 = scalar_lea.vmem [#allocation7], %s394
        // Predicated region
        $region41: #{_forward.5} parent=31 // pred_check
          %p396 = pneg %p107
        $region42: #{_forward.5} parent=31 // pred_check_branch
          %398 = sbr.rel (%p396) target = $region44
        $region43: #{_forward.5} parent=31 // pred_region
          %400 = vsyncadd %s392, 0
          %s401 = smul.addr %s21, 8
          %s402 = scalar_lea.hbm %s3, %s401
          %s404 = sshll.u32 %s395, 4
          %s405 = int_to_ptr.vmem [resolvable:$true] %s404
          %s406 = sshll.u32 %s402, 4
          %s407 = int_to_ptr.hbm [resolvable:$true] %s406
          %409 = dma.vmem_to_hbm [thread:$0]  %s405, 128, %s407, %s392
        $region44: #{_forward.5} parent=31 // pred_fallthru
          _
      $region32: #{_forward.5} parent=5 // pred_fallthru
        _
      %p410 = scmp.le.s32.totalorder 2, %s16
      // Predicated region
      $region45: #{_forward.5} parent=5 // pred_check
        %p411 = pneg %p410
      $region46: #{_forward.5} parent=5 // pred_check_branch
        %413 = sbr.rel (%p411) target = $region48
      $region47: #{_forward.5} parent=5 // pred_region
        %s414 = ssub.s32 %s16, 2
        // Predicated region
        $region49: #{_forward.5} parent=47 // pred_check
          %p415 = pneg %p113
        $region50: #{_forward.5} parent=47 // pred_check_branch
          %417 = sbr.rel (%p415) target = $region52
        $region51: #{_forward.5} parent=47 // pred_region
          %s418 = sand.u32 %s98, 1
          %s419 = scalar_lea.sflag [#allocation4], %s418
          %s420 = sand.u32 %s98, 1
          %s421 = smul.addr %s420, 8
          %s422 = scalar_lea.vmem [#allocation7], %s421
          %424 = dma.done %s419, 128
        $region52: #{_forward.5} parent=47 // pred_fallthru
          _
      $region48: #{_forward.5} parent=5 // pred_fallthru
        _
    $region6: #{_forward.5} parent=1 // loop_footer
      %s20 = sadd.s32 1, %s16
    $region7: #{_forward.5} parent=1 // loop_footer_branch
      %15 = sbr.rel target = $region3
    $region8: #{_forward.5} parent=1 // loop_exit
      _
    %425 = vsyncpa [#allocation3], 1
    %s426 = scalar_lea.sflag [#allocation3], 1
    %427 = vsyncpa %s426, 1
    %428 = vsyncpa [#allocation6], 1
    %429 = vsyncpa [#allocation4], 1
    %s430 = scalar_lea.sflag [#allocation4], 1
    %431 = vsyncpa %s430, 1

// kernel: _forward.4
$region0: #{_forward.4}
  #allocation0 [shape = 'u32[]', space=smem, size = 0x4, offset = 0x4, fixed_abs, tag = 'smem constant byte address 0x4 - core index']
  #allocation1 [shape = 'u32[72,128]{1,0:T(1,128)}', space=vmem, size = 0x9000, scoped, tag = 'internal scratch']
  %s0 = inlined_call_operand.hbm [shape: f32[16,384], index: 0, kind: input, shape index: {}]
  %s1 = inlined_call_operand.vmem [shape: bf16[384,128], index: 1, kind: input, shape index: {}]
  %s2 = inlined_call_operand.vmem [shape: f32[3,128], index: 2, kind: input, shape index: {}]
  %s3 = inlined_call_operand.hbm [shape: f32[16,128], index: 3, kind: output, shape index: {}]
  %s4 = sld [smem:[#allocation0]]
  $region49: #{_forward.4} parent=0
    _
  %s6 = ssub.s32 1, %s4
  %s7 = scalar_select 0, %s6, %s4
  $region1: #{_forward.4} parent=0
    #allocation2 [shape = 'u8[24576]{0}', space=vmem, size = 0x6000, scoped, tag = 'input window, operand 0']
    #allocation3 [shape = 's32[2]{0}', space=sflag, size = 0x8, scoped, tag = 'scoped memory for _forward.4']
    #allocation4 [shape = 's32[2]{0}', space=sflag, size = 0x8, scoped, tag = 'scoped memory for _forward.4']
    #allocation5 [shape = 'u8[8192]{0}', space=vmem, size = 0x2000, scoped, tag = 'output window, operand 0']
    %8 = vsyncpa [#allocation3], 0
    %s9 = scalar_lea.sflag [#allocation3], 1
    %10 = vsyncpa %s9, 0
    %11 = vsyncpa [#allocation4], 0
    %s12 = scalar_lea.sflag [#allocation4], 1
    %13 = vsyncpa %s12, 0
    loop: start=0, step=1, limit=4
    $region2: #{_forward.4} parent=1 // loop_pre_header
      _
    $region3: #{_forward.4} parent=1 // loop_header
      %s15 = sphi 0, %s19
      %p16 = scmp.ge.s32.totalorder %s15, 4
      %s25 = sphi 0, %s27
      %s28 = sphi 0, %s25
      %s29 = sphi 0, %s28
      %s45 = sphi 0, %s29
      %s49 = sphi 0, %s49
      %s51 = sphi 0, %s49
      %s52 = sphi 0, %s51
      %s66 = sphi 0, %s52
      %s70 = sphi 0, %s70
      %s72 = sphi 0, %s70
      %s73 = sphi 0, %s72
      %s87 = sphi 0, %s73
      %s93 = sphi 0, %s95
      %s96 = sphi 0, %s93
      %s97 = sphi 0, %s96
      %s113 = sphi 0, %s97
    $region4: #{_forward.4} parent=1 // loop_header_branch
      %18 = sbr.rel (%p16) target = $region8
    $region5: #{_forward.4} parent=1 // loop_body
      %s20 = ssub.s32 %s15, 1
      %s21 = ssub.s32 %s15, 2
      %s22 = sadd.s32 %s15, 1
      %s23 = ssub.s32 %s15, %s22
      %p24 = scmp.eq.s32.totalorder %s23, 0
      %s26 = sadd.s32 %s25, 1
      %s27 = scalar_select %p24, %s25, %s26
      %p30 = pneg %p24
      %p31 = scmp.eq.s32.totalorder %s15, 1
      %p32 = por %p30, %p31
      %p33 = scmp.ne.s32.totalorder %s25, %s28
      %p34 = scmp.eq.s32.totalorder %s15, 0
      %p35 = por %p33, %p34
      %p36 = scmp.ne.s32.totalorder %s25, %s28
      %p37 = scmp.eq.s32.totalorder %s20, 1
      %p38 = por %p36, %p37
      %p39 = scmp.ne.s32.totalorder %s28, %s29
      %p40 = scmp.eq.s32.totalorder %s20, 0
      %p41 = por %p39, %p40
      %p42 = scmp.ne.s32.totalorder %s28, %s29
      %p43 = scmp.eq.s32.totalorder %s21, 1
      %p44 = por %p42, %p43
      %p46 = scmp.ne.s32.totalorder %s29, %s45
      %p47 = scmp.eq.s32.totalorder %s21, 0
      %p48 = por %p46, %p47
      %s50 = sadd.s32 %s49, 1
      %p53 = scmp.eq.s32.totalorder %s15, 1
      %p54 = scmp.ne.s32.totalorder %s49, %s51
      %p55 = scmp.eq.s32.totalorder %s15, 0
      %p56 = por %p54, %p55
      %p57 = scmp.ne.s32.totalorder %s49, %s51
      %p58 = scmp.eq.s32.totalorder %s20, 1
      %p59 = por %p57, %p58
      %p60 = scmp.ne.s32.totalorder %s51, %s52
      %p61 = scmp.eq.s32.totalorder %s20, 0
      %p62 = por %p60, %p61
      %p63 = scmp.ne.s32.totalorder %s51, %s52
      %p64 = scmp.eq.s32.totalorder %s21, 1
      %p65 = por %p63, %p64
      %p67 = scmp.ne.s32.totalorder %s52, %s66
      %p68 = scmp.eq.s32.totalorder %s21, 0
      %p69 = por %p67, %p68
      %s71 = sadd.s32 %s70, 1
      %p74 = scmp.eq.s32.totalorder %s15, 1
      %p75 = scmp.ne.s32.totalorder %s70, %s72
      %p76 = scmp.eq.s32.totalorder %s15, 0
      %p77 = por %p75, %p76
      %p78 = scmp.ne.s32.totalorder %s70, %s72
      %p79 = scmp.eq.s32.totalorder %s20, 1
      %p80 = por %p78, %p79
      %p81 = scmp.ne.s32.totalorder %s72, %s73
      %p82 = scmp.eq.s32.totalorder %s20, 0
      %p83 = por %p81, %p82
      %p84 = scmp.ne.s32.totalorder %s72, %s73
      %p85 = scmp.eq.s32.totalorder %s21, 1
      %p86 = por %p84, %p85
      %p88 = scmp.ne.s32.totalorder %s73, %s87
      %p89 = scmp.eq.s32.totalorder %s21, 0
      %p90 = por %p88, %p89
      %s91 = ssub.s32 %s15, %s22
      %p92 = scmp.eq.s32.totalorder %s91, 0
      %s94 = sadd.s32 %s93, 1
      %s95 = scalar_select %p92, %s93, %s94
      %p98 = pneg %p92
      %p99 = scmp.eq.s32.totalorder %s15, 1
      %p100 = por %p98, %p99
      %p101 = scmp.ne.s32.totalorder %s93, %s96
      %p102 = scmp.eq.s32.totalorder %s15, 0
      %p103 = por %p101, %p102
      %p104 = scmp.ne.s32.totalorder %s93, %s96
      %p105 = scmp.eq.s32.totalorder %s20, 1
      %p106 = por %p104, %p105
      %p107 = scmp.ne.s32.totalorder %s96, %s97
      %p108 = scmp.eq.s32.totalorder %s20, 0
      %p109 = por %p107, %p108
      %p110 = scmp.ne.s32.totalorder %s96, %s97
      %p111 = scmp.eq.s32.totalorder %s21, 1
      %p112 = por %p110, %p111
      %p114 = scmp.ne.s32.totalorder %s97, %s113
      %p115 = scmp.eq.s32.totalorder %s21, 0
      %p116 = por %p114, %p115
      %p117 = scmp.le.s32.totalorder 1, %s15
      %p118 = scmp.lt.s32.totalorder %s15, 3
      %p119 = pnand %p117, %p118
      %p120 = pneg %p119
      // Predicated region
      $region9: #{_forward.4} parent=5 // pred_check
        _
      $region10: #{_forward.4} parent=5 // pred_check_branch
        %122 = sbr.rel (%p119) target = $region12
      $region11: #{_forward.4} parent=5 // pred_region
        %s123 = ssub.s32 %s15, 1
        // Predicated region
        $region13: #{_forward.4} parent=11 // pred_check
          %p124 = pneg %p62
        $region14: #{_forward.4} parent=11 // pred_check_branch
          %126 = sbr.rel (%p124) target = $region16
        $region15: #{_forward.4} parent=11 // pred_region
          _
        $region16: #{_forward.4} parent=11 // pred_fallthru
          _
        // Predicated region
        $region17: #{_forward.4} parent=11 // pred_check
          %p127 = pneg %p83
        $region18: #{_forward.4} parent=11 // pred_check_branch
          %129 = sbr.rel (%p127) target = $region20
        $region19: #{_forward.4} parent=11 // pred_region
          _
        $region20: #{_forward.4} parent=11 // pred_fallthru
          _
      $region12: #{_forward.4} parent=5 // pred_fallthru
        _
      %p130 = scmp.lt.s32.totalorder %s15, 2
      // Predicated region
      $region21: #{_forward.4} parent=5 // pred_check
        %p131 = pneg %p130
      $region22: #{_forward.4} parent=5 // pred_check_branch
        %133 = sbr.rel (%p131) target = $region24
      $region23: #{_forward.4} parent=5 // pred_region
        // Predicated region
        $region25: #{_forward.4} parent=23 // pred_check
          %p134 = pneg %p35
        $region26: #{_forward.4} parent=23 // pred_check_branch
          %136 = sbr.rel (%p134) target = $region28
        $region27: #{_forward.4} parent=23 // pred_region
          %s137 = sand.u32 %s25, 1
          %s138 = scalar_lea.sflag [#allocation3], %s137
          %s139 = sand.u32 %s25, 1
          %s140 = smul.addr %s139, 24
          %s141 = scalar_lea.vmem [#allocation2], %s140
          %143 = vsyncadd %s138, 0
          %s144 = smul.addr %s15, 3
          %s145 = smul.addr %s144, 8
          %s146 = scalar_lea.hbm %s0, %s145
          %s148 = sshll.u32 %s146, 4
          %s149 = int_to_ptr.hbm [resolvable:$true] %s148
          %s150 = sshll.u32 %s141, 4
          %s151 = int_to_ptr.vmem [resolvable:$true] %s150
          %153 = dma.hbm_to_vmem [thread:$0]  %s149, 384, %s151, %s138
        $region28: #{_forward.4} parent=23 // pred_fallthru
          _
      $region24: #{_forward.4} parent=5 // pred_fallthru
        _
      %p154 = scmp.le.s32.totalorder 1, %s15
      %p155 = scmp.lt.s32.totalorder %s15, 3
      %p156 = pnand %p154, %p155
      %p157 = pneg %p156
      // Predicated region
      $region29: #{_forward.4} parent=5 // pred_check
        _
      $region30: #{_forward.4} parent=5 // pred_check_branch
        %159 = sbr.rel (%p156) target = $region32
      $region31: #{_forward.4} parent=5 // pred_region
        %s160 = ssub.s32 %s15, 1
        %s161 = sand.u32 %s28, 1
        %s162 = scalar_lea.sflag [#allocation3], %s161
        %s163 = sand.u32 %s28, 1
        %s164 = smul.addr %s163, 24
        %s165 = scalar_lea.vmem [#allocation2], %s164
        // Predicated region
        $region33: #{_forward.4} parent=31 // pred_check
          %p166 = pneg %p41
        $region34: #{_forward.4} parent=31 // pred_check_branch
          %168 = sbr.rel (%p166) target = $region36
        $region35: #{_forward.4} parent=31 // pred_region
          %170 = dma.done %s162, 384
        $region36: #{_forward.4} parent=31 // pred_fallthru
          _
        %s171 = sand.u32 %s28, 1
        %s172 = scalar_lea.sflag [#allocation3], %s171
        %s173 = sand.u32 %s28, 1
        %s174 = smul.addr %s173, 24
        %s175 = scalar_lea.vmem [#allocation2], %s174
        %p176 = pneg %p41
        %p177 = pneg %p38
        %p178 = pneg %p62
        %p179 = pneg %p59
        %p180 = pneg %p83
        %p181 = pneg %p80
        %p182 = pneg %p109
        %p183 = pneg %p106
        %s184 = sand.u32 %s96, 1
        %s185 = scalar_lea.sflag [#allocation4], %s184
        %s186 = sand.u32 %s96, 1
        %s187 = smul.addr %s186, 8
        %s188 = scalar_lea.vmem [#allocation5], %s187
        %v189 = vld [vmem:[%s165] sm:$0xff]
        %v190 = vld [vmem:[%s165 + $0x8] sm:$0xff]
        %v191 = vld [vmem:[%s165 + $0x10] sm:$0xff]
        %v192 = vpack.c.bf16 %v189, %v189
        %v193 = vpack.c.bf16 %v190, %v190
        %v194 = vpack.c.bf16 %v191, %v191
        %v195 = vld [vmem:[%s1] sm:$0xf]
        %v196 = vld [vmem:[%s1 + $0x4] sm:$0xf]
        %v197 = vld [vmem:[%s1 + $0x8] sm:$0xf]
        %v198 = vld [vmem:[%s1 + $0xc] sm:$0xf]
        %v199 = vld [vmem:[%s1 + $0x10] sm:$0xf]
        %v200 = vld [vmem:[%s1 + $0x14] sm:$0xf]
        %v201 = vld [vmem:[%s1 + $0x18] sm:$0xf]
        %v202 = vld [vmem:[%s1 + $0x1c] sm:$0xf]
        %v203 = vld [vmem:[%s1 + $0x20] sm:$0xf]
        %v204 = vld [vmem:[%s1 + $0x24] sm:$0xf]
        %v205 = vld [vmem:[%s1 + $0x28] sm:$0xf]
        %v206 = vld [vmem:[%s1 + $0x2c] sm:$0xf]
        %v207 = vld [vmem:[%s1 + $0x30] sm:$0xf]
        %v208 = vld [vmem:[%s1 + $0x34] sm:$0xf]
        %v209 = vld [vmem:[%s1 + $0x38] sm:$0xf]
        %v210 = vld [vmem:[%s1 + $0x3c] sm:$0xf]
        %v211 = vld [vmem:[%s1 + $0x40] sm:$0xf]
        %v212 = vld [vmem:[%s1 + $0x44] sm:$0xf]
        %v213 = vld [vmem:[%s1 + $0x48] sm:$0xf]
        %v214 = vld [vmem:[%s1 + $0x4c] sm:$0xf]
        %v215 = vld [vmem:[%s1 + $0x50] sm:$0xf]
        %v216 = vld [vmem:[%s1 + $0x54] sm:$0xf]
        %v217 = vld [vmem:[%s1 + $0x58] sm:$0xf]
        %v218 = vld [vmem:[%s1 + $0x5c] sm:$0xf]
        %v219 = vld [vmem:[%s1 + $0x60] sm:$0xf]
        %v220 = vld [vmem:[%s1 + $0x64] sm:$0xf]
        %v221 = vld [vmem:[%s1 + $0x68] sm:$0xf]
        %v222 = vld [vmem:[%s1 + $0x6c] sm:$0xf]
        %v223 = vld [vmem:[%s1 + $0x70] sm:$0xf]
        %v224 = vld [vmem:[%s1 + $0x74] sm:$0xf]
        %v225 = vld [vmem:[%s1 + $0x78] sm:$0xf]
        %v226 = vld [vmem:[%s1 + $0x7c] sm:$0xf]
        %v227 = vld [vmem:[%s1 + $0x80] sm:$0xf]
        %v228 = vld [vmem:[%s1 + $0x84] sm:$0xf]
        %v229 = vld [vmem:[%s1 + $0x88] sm:$0xf]
        %v230 = vld [vmem:[%s1 + $0x8c] sm:$0xf]
        %v231 = vld [vmem:[%s1 + $0x90] sm:$0xf]
        %v232 = vld [vmem:[%s1 + $0x94] sm:$0xf]
        %v233 = vld [vmem:[%s1 + $0x98] sm:$0xf]
        %v234 = vld [vmem:[%s1 + $0x9c] sm:$0xf]
        %v235 = vld [vmem:[%s1 + $0xa0] sm:$0xf]
        %v236 = vld [vmem:[%s1 + $0xa4] sm:$0xf]
        %v237 = vld [vmem:[%s1 + $0xa8] sm:$0xf]
        %v238 = vld [vmem:[%s1 + $0xac] sm:$0xf]
        %v239 = vld [vmem:[%s1 + $0xb0] sm:$0xf]
        %v240 = vld [vmem:[%s1 + $0xb4] sm:$0xf]
        %v241 = vld [vmem:[%s1 + $0xb8] sm:$0xf]
        %v242 = vld [vmem:[%s1 + $0xbc] sm:$0xf]
        %v243 = vld [vmem:[%s2] sm:$0x7]
        %v244 = vperm.slane %v243, 0
        %v293 = vunpack.c.l.b16 %v195
        %v294 = vunpack.c.l.b16 %v196
        %v295 = vunpack.c.l.b16 %v197
        %v296 = vunpack.c.l.b16 %v198
        %v297 = vunpack.c.l.b16 %v199
        %v298 = vunpack.c.l.b16 %v200
        %v299 = vunpack.c.l.b16 %v201
        %v300 = vunpack.c.l.b16 %v202
        %v301 = vunpack.c.l.b16 %v203
        %v302 = vunpack.c.l.b16 %v204
        %v303 = vunpack.c.l.b16 %v205
        %v304 = vunpack.c.l.b16 %v206
        %v305 = vunpack.c.l.b16 %v207
        %v306 = vunpack.c.l.b16 %v208
        %v307 = vunpack.c.l.b16 %v209
        %v308 = vunpack.c.l.b16 %v210
        %v309 = vunpack.c.l.b16 %v211
        %v310 = vunpack.c.l.b16 %v212
        %v311 = vunpack.c.l.b16 %v213
        %v312 = vunpack.c.l.b16 %v214
        %v313 = vunpack.c.l.b16 %v215
        %v314 = vunpack.c.l.b16 %v216
        %v315 = vunpack.c.l.b16 %v217
        %v316 = vunpack.c.l.b16 %v218
        %v317 = vunpack.c.l.b16 %v219
        %v318 = vunpack.c.l.b16 %v220
        %v319 = vunpack.c.l.b16 %v221
        %v320 = vunpack.c.l.b16 %v222
        %v321 = vunpack.c.l.b16 %v223
        %v322 = vunpack.c.l.b16 %v224
        %v323 = vunpack.c.l.b16 %v225
        %v324 = vunpack.c.l.b16 %v226
        %v325 = vunpack.c.l.b16 %v227
        %v326 = vunpack.c.l.b16 %v228
        %v327 = vunpack.c.l.b16 %v229
        %v328 = vunpack.c.l.b16 %v230
        %v329 = vunpack.c.l.b16 %v231
        %v330 = vunpack.c.l.b16 %v232
        %v331 = vunpack.c.l.b16 %v233
        %v332 = vunpack.c.l.b16 %v234
        %v333 = vunpack.c.l.b16 %v235
        %v334 = vunpack.c.l.b16 %v236
        %v335 = vunpack.c.l.b16 %v237
        %v336 = vunpack.c.l.b16 %v238
        %v337 = vunpack.c.l.b16 %v239
        %v338 = vunpack.c.l.b16 %v240
        %v339 = vunpack.c.l.b16 %v241
        %v340 = vunpack.c.l.b16 %v242
        %v341 = vpack.c.b16 %v294, %v293
        %v342 = vpack.c.b16 %v296, %v295
        %v343 = vpack.c.b16 %v298, %v297
        %v344 = vpack.c.b16 %v300, %v299
        %v345 = vpack.c.b16 %v302, %v301
        %v346 = vpack.c.b16 %v304, %v303
        %v347 = vpack.c.b16 %v306, %v305
        %v348 = vpack.c.b16 %v308, %v307
        %v349 = vpack.c.b16 %v310, %v309
        %v350 = vpack.c.b16 %v312, %v311
        %v351 = vpack.c.b16 %v314, %v313
        %v352 = vpack.c.b16 %v316, %v315
        %v353 = vpack.c.b16 %v318, %v317
        %v354 = vpack.c.b16 %v320, %v319
        %v355 = vpack.c.b16 %v322, %v321
        %v356 = vpack.c.b16 %v324, %v323
        %v357 = vpack.c.b16 %v326, %v325
        %v358 = vpack.c.b16 %v328, %v327
        %v359 = vpack.c.b16 %v330, %v329
        %v360 = vpack.c.b16 %v332, %v331
        %v361 = vpack.c.b16 %v334, %v333
        %v362 = vpack.c.b16 %v336, %v335
        %v363 = vpack.c.b16 %v338, %v337
        %v364 = vpack.c.b16 %v340, %v339
        %389 = vmatpush.bf16.msra.mxu0 %v348
        %390 = vmatpush.bf16.msra.mxu0 %v347
        %391 = vmatpush.bf16.msra.mxu0 %v346
        %392 = vmatpush.bf16.msra.mxu0 %v345
        %393 = vmatpush.bf16.msra.mxu0 %v344
        %394 = vmatpush.bf16.msra.mxu0 %v343
        %395 = vmatpush.bf16.msra.mxu0 %v342
        %396 = vmatpush.bf16.msra.mxu0 %v341
        %397 = vmatmul.bf16.gmra.mxu0 %v192
        %v398 = vpop.f32.mrf.mxu0
        %v399 = vadd.f32 %v244, %v398
        %v400 = vpop.f32.mrf.mxu0
        %401 = vdwg.mxu0
        %402 = vmatpush.bf16.msra.mxu0 %v356
        %403 = vmatpush.bf16.msra.mxu0 %v355
        %404 = vmatpush.bf16.msra.mxu0 %v354
        %405 = vmatpush.bf16.msra.mxu0 %v353
        %406 = vmatpush.bf16.msra.mxu0 %v352
        %407 = vmatpush.bf16.msra.mxu0 %v351
        %408 = vmatpush.bf16.msra.mxu0 %v350
        %409 = vmatpush.bf16.msra.mxu0 %v349
        %410 = vmatmul.bf16.gmra.mxu0 %v193
        %v411 = vpop.f32.mrf.mxu0
        %v412 = vadd.f32 %v399, %v411
        %v413 = vpop.f32.mrf.mxu0
        %414 = vdwg.mxu0
        %415 = vmatpush.bf16.msra.mxu0 %v364
        %416 = vmatpush.bf16.msra.mxu0 %v363
        %417 = vmatpush.bf16.msra.mxu0 %v362
        %418 = vmatpush.bf16.msra.mxu0 %v361
        %419 = vmatpush.bf16.msra.mxu0 %v360
        %420 = vmatpush.bf16.msra.mxu0 %v359
        %421 = vmatpush.bf16.msra.mxu0 %v358
        %422 = vmatpush.bf16.msra.mxu0 %v357
        %423 = vmatmul.bf16.gmra.mxu0 %v194
        %v424 = vpop.f32.mrf.mxu0
        %v425 = vadd.f32 %v412, %v424
        %v426 = vpop.f32.mrf.mxu0
        %427 = vdwg.mxu0
        %428 = vadd.xlane.f32.xlu0 %v425
        %v429 = vpop.xlane.xlu0 %428
        %v430 = vmul.f32 %v429, 0.0078125
        %v431 = vsub.f32 %v425, %v430
        %v432 = vmul.f32 %v431, %v431
        %433 = vadd.xlane.f32.xlu0 %v432
        %v434 = vpop.xlane.xlu0 %433
        %v435 = vmul.f32 %v434, 0.0078125
        %v436 = vadd.f32 %v435, 1e-05
        %v437 = vrsqrt.pop %v436
        %v438 = vmul.f32 %v437, %v436
        %v439 = vmul.f32 %v438, %v437
        %v440 = vmul.f32 0.5, %v439
        %v441 = vsub.f32 1.5, %v440
        %v442 = vmul.f32 %v437, %v441
        %vm443 = vweird.f32 %v436
        %vm444 = vweird.f32 %v437
        %vm445 = vmor %vm443, %vm444
        %v446 = vsel %vm445, %v437, %v442
        %v447 = vmul.f32 %v431, %v446
        %v448 = vperm.slane %v243, 1
        %v449 = vmul.f32 %v447, %v448
        %v450 = vperm.slane %v243, 2
        %v451 = vadd.f32 %v449, %v450
        %452 = vst [vmem:[%s188] sm:$0xff] %v451
        %s453 = sand.u32 %s96, 1
        %s454 = scalar_lea.sflag [#allocation4], %s453
        %s455 = sand.u32 %s96, 1
        %s456 = smul.addr %s455, 8
        %s457 = scalar_lea.vmem [#allocation5], %s456
        // Predicated region
        $region37: #{_forward.4} parent=31 // pred_check
          %p458 = pneg %p106
        $region38: #{_forward.4} parent=31 // pred_check_branch
          %460 = sbr.rel (%p458) target = $region40
        $region39: #{_forward.4} parent=31 // pred_region
          %462 = vsyncadd %s454, 0
          %s463 = smul.addr %s20, 8
          %s464 = scalar_lea.hbm %s3, %s463
          %s466 = sshll.u32 %s457, 4
          %s467 = int_to_ptr.vmem [resolvable:$true] %s466
          %s468 = sshll.u32 %s464, 4
          %s469 = int_to_ptr.hbm [resolvable:$true] %s468
          %471 = dma.vmem_to_hbm [thread:$0]  %s467, 128, %s469, %s454
        $region40: #{_forward.4} parent=31 // pred_fallthru
          _
      $region32: #{_forward.4} parent=5 // pred_fallthru
        _
      %p472 = scmp.le.s32.totalorder 2, %s15
      // Predicated region
      $region41: #{_forward.4} parent=5 // pred_check
        %p473 = pneg %p472
      $region42: #{_forward.4} parent=5 // pred_check_branch
        %475 = sbr.rel (%p473) target = $region44
      $region43: #{_forward.4} parent=5 // pred_region
        %s476 = ssub.s32 %s15, 2
        // Predicated region
        $region45: #{_forward.4} parent=43 // pred_check
          %p477 = pneg %p112
        $region46: #{_forward.4} parent=43 // pred_check_branch
          %479 = sbr.rel (%p477) target = $region48
        $region47: #{_forward.4} parent=43 // pred_region
          %s480 = sand.u32 %s97, 1
          %s481 = scalar_lea.sflag [#allocation4], %s480
          %s482 = sand.u32 %s97, 1
          %s483 = smul.addr %s482, 8
          %s484 = scalar_lea.vmem [#allocation5], %s483
          %486 = dma.done %s481, 128
        $region48: #{_forward.4} parent=43 // pred_fallthru
          _
      $region44: #{_forward.4} parent=5 // pred_fallthru
        _
    $region6: #{_forward.4} parent=1 // loop_footer
      %s19 = sadd.s32 1, %s15
    $region7: #{_forward.4} parent=1 // loop_footer_branch
      %14 = sbr.rel target = $region3
    $region8: #{_forward.4} parent=1 // loop_exit
      _
    %487 = vsyncpa [#allocation3], 1
    %s488 = scalar_lea.sflag [#allocation3], 1
    %489 = vsyncpa %s488, 1
    %490 = vsyncpa [#allocation4], 1
    %s491 = scalar_lea.sflag [#allocation4], 1
    %492 = vsyncpa %s491, 1

</llo_original>
